<compile_context>
chip_gen: v6e
topology: v6e:2x2x1
jax: 0.10.0
libtpu: 0.0.40
codegen_flags: <defaults>
</compile_context>

<pallas_src>
import functools

import jax
import jax.numpy as jnp
from jax.experimental import pallas as pl
from jax.experimental.pallas import tpu as pltpu


ROW_CHUNK = 8      # sublanes per in-kernel chunk (one f32 vreg height)
LANE_CHUNK = 128   # lanes per in-kernel chunk (one vreg width)


def relu_diffusion_kernel(p_ref, x_ref, o_ref, *, dims):
    """Fused 5-layer MLP on the VPU.

    p_ref: f32[P] packed (w1, b1, ..., w5, b5) in SMEM; w stored (in, out) row-major.
    x_ref: (d, sub_rows, 128) VMEM block — feature-major, batch in sublanes+lanes.
    o_ref: (sub_rows, 128) VMEM block — single output feature, lane-dense.
    """
    d = dims[0]
    n_layers = len(dims) - 1

    # Hoist all SMEM scalar parameter reads out of the chunk loops: one read per
    # parameter per grid step, reused by every (8, 128) chunk below.
    weights = []
    biases = []
    off = 0
    for li in range(n_layers):
        n_in, n_out = dims[li], dims[li + 1]
        w = [[p_ref[off + i * n_out + j] for j in range(n_out)] for i in range(n_in)]
        off += n_in * n_out
        b = [p_ref[off + j] for j in range(n_out)]
        off += n_out
        weights.append(w)
        biases.append(b)

    sub_rows = x_ref.shape[1]
    lanes = x_ref.shape[2]

    # Full 5-layer pipeline per (8, 128) chunk.  A layer boundary then keeps at
    # most 8 old + 8 new activation vregs + 3 input vregs + a few temps live
    # (~20 vregs), so Mosaic never spills; the previous (8, 512) formulation
    # needed ~64+ live vregs and shifted the bottleneck onto vst/vld slots.
    for r0 in range(0, sub_rows, ROW_CHUNK):
        for c0 in range(0, lanes, LANE_CHUNK):
            h = [x_ref[i, r0:r0 + ROW_CHUNK, c0:c0 + LANE_CHUNK] for i in range(d)]
            for li in range(n_layers):
                n_in, n_out = dims[li], dims[li + 1]
                new_h = []
                for j in range(n_out):
                    # out_j = b_j + sum_i w[i, j] * h_i  — scalar*tile FMAs, no MXU
                    # (3x8 / 8x8 / 8x1 contractions would waste a 128x128+ array).
                    acc = h[0] * weights[li][0][j]
                    for i in range(1, n_in):
                        acc = acc + h[i] * weights[li][i][j]
                    acc = acc + biases[li][j]
                    if li < n_layers - 1:  # ReLU after fc1..fc4, not after fc5
                        acc = jnp.maximum(acc, 0.0)
                    new_h.append(acc)
                h = new_h
            o_ref[r0:r0 + ROW_CHUNK, c0:c0 + LANE_CHUNK] = h[0].astype(o_ref.dtype)


def _pack_params(params):
    n_layers = len(params) // 2
    parts = []
    for k in range(1, n_layers + 1):
        parts.append(params[f"w{k}"].reshape(-1))
        parts.append(params[f"b{k}"].reshape(-1))
    return jnp.concatenate(parts).astype(jnp.float32)


def _plan_tiling(B, min_grid_steps, max_chunks_per_step):
    """Choose rows-per-step so the grid has >= min_grid_steps steps when possible."""
    quantum = ROW_CHUNK * LANE_CHUNK  # 1024 rows of x per (8, 128) chunk
    n_quanta = pl.cdiv(B, quantum)
    chunks = max(1, min(max_chunks_per_step, n_quanta // min_grid_steps))
    n_quanta_padded = pl.cdiv(n_quanta, chunks) * chunks
    padded_b = n_quanta_padded * quantum
    sub_rows = ROW_CHUNK * chunks
    return padded_b, sub_rows


def to_kernel_layout(x, padded_b):
    """(B, d) -> (d, rows, 128) batch-in-lanes layout (pad ragged tail to 1024 rows).

    In a real diffusion loop this layout is built ONCE and reused across steps
    (the transpose + pad are extra HBM passes that should not be paid per call).
    """
    B, d = x.shape
    if padded_b != B:
        x = jnp.pad(x, ((0, padded_b - B), (0, 0)))
    rows = padded_b // LANE_CHUNK
    return x.T.reshape(d, rows, LANE_CHUNK)


def relu_diffusion_forward_layout(xt, packed, dims, sub_rows):
    """Run the kernel on pre-transposed input xt: (d, rows, 128)."""
    d, rows, lanes = xt.shape
    grid = (rows // sub_rows,)
    return pl.pallas_call(
        functools.partial(relu_diffusion_kernel, dims=dims),
        out_shape=jax.ShapeDtypeStruct((rows, lanes), jnp.float32),
        grid_spec=pltpu.PrefetchScalarGridSpec(
            num_scalar_prefetch=0,
            grid=grid,
            in_specs=[
                # Packed weights/biases: whole tiny vector resident in SMEM
                # (constant block index -> copied in once, read as scalars).
                pl.BlockSpec(memory_space=pltpu.MemorySpace.SMEM),
                # Batch tile of x: (d, sub_rows, 128) — last two dims (8k, 128) dense.
                pl.BlockSpec((d, sub_rows, lanes), lambda i: (0, i, 0)),
            ],
            out_specs=pl.BlockSpec((sub_rows, lanes), lambda i: (i, 0)),
        ),
        compiler_params=pltpu.CompilerParams(
            dimension_semantics=("parallel",)),
    )(packed, xt)


@functools.partial(jax.jit, static_argnames=("min_grid_steps", "max_chunks_per_step"))
def relu_diffusion_forward(x, params, *, min_grid_steps=8, max_chunks_per_step=8):
    """x: (B, d) float32. params: dict with w1..w5 shaped (in, out), b1..b5 shaped (out,)."""
    B, d = x.shape
    n_layers = len(params) // 2
    dims = (d,) + tuple(params[f"w{k}"].shape[1] for k in range(1, n_layers + 1))
    assert dims[-1] == 1, "kernel expects a single output feature (fc5 -> 1)"

    packed = _pack_params(params)
    padded_b, sub_rows = _plan_tiling(B, min_grid_steps, max_chunks_per_step)
    xt = to_kernel_layout(x, padded_b)

    out2d = relu_diffusion_forward_layout(xt, packed, dims, sub_rows)
    return out2d.reshape(padded_b, 1)[:B]


def init_params(key, d=3, n=8):
    """U(-1/sqrt(fan_in), +1/sqrt(fan_in)) init like torch.nn.Linear; weights stored (in, out)."""
    layer_dims = [(d, n), (n, n), (n, n), (n, n), (n, 1)]
    params = {}
    for idx, (fan_in, fan_out) in enumerate(layer_dims, start=1):
        key, kw, kb = jax.random.split(key, 3)
        bound = 1.0 / jnp.sqrt(jnp.float32(fan_in))
        params[f"w{idx}"] = jax.random.uniform(
            kw, (fan_in, fan_out), jnp.float32, minval=-bound, maxval=bound)
        params[f"b{idx}"] = jax.random.uniform(
            kb, (fan_out,), jnp.float32, minval=-bound, maxval=bound)
    return params


def reference_forward(x, params):
    n_layers = len(params) // 2
    h = x
    for k in range(1, n_layers + 1):
        h = jnp.einsum("bi,io->bo", h, params[f"w{k}"],
                       precision=jax.lax.Precision.HIGHEST) + params[f"b{k}"]
        if k < n_layers:
            h = jnp.maximum(h, 0.0)
    return h


if __name__ == "__main__":
    d, n = 3, 8
    # Ragged batch: pads to 8192 rows -> grid of 8 steps of 1024 rows each
    # (>=4 steps per v7x TensorCore), exercising both the pipeline and the
    # 1024-row padding granularity.
    B = 8000

    key = jax.random.PRNGKey(0)
    key, kx = jax.random.split(key)
    x = jax.random.normal(kx, (B, d), jnp.float32)
    params = init_params(key, d=d, n=n)

    out = relu_diffusion_forward(x, params)
    out = jax.block_until_ready(out)

    ref = reference_forward(x, params)
    assert out.shape == (B, 1), out.shape
    assert jnp.allclose(out, ref, atol=2e-5, rtol=2e-5), \
        float(jnp.max(jnp.abs(out - ref)))

    print("KERNEL_OK")
</pallas_src>

<mosaic_0001>
module attributes {stable_mosaic.version = 11 : i64} {
  func.func @relu_diffusion_kernel(%arg0: i32, %arg1: memref<257xf32, #tpu.memory_space<smem>>, %arg2: memref<3x8x128xf32, #tpu.memory_space<vmem>>, %arg3: memref<8x128xf32, #tpu.memory_space<vmem>>) attributes {dimension_semantics = [#tpu.dimension_semantics<parallel>], iteration_bounds = array<i64: 8>, scalar_prefetch = 0 : i64, scratch_operands = 0 : i64, tpu.core_type = #tpu.core_type<tc>, window_params = [{transform_indices = @transform_0, window_bounds = array<i64: 257>}, {transform_indices = @transform_1, window_bounds = array<i64: 3, 8, 128>}, {transform_indices = @transform_2, window_bounds = array<i64: 8, 128>}]} {
    %c0 = arith.constant 0 : index
    %0 = memref.load %arg1[%c0] : memref<257xf32, #tpu.memory_space<smem>>
    %c1 = arith.constant 1 : index
    %1 = memref.load %arg1[%c1] : memref<257xf32, #tpu.memory_space<smem>>
    %c2 = arith.constant 2 : index
    %2 = memref.load %arg1[%c2] : memref<257xf32, #tpu.memory_space<smem>>
    %c3 = arith.constant 3 : index
    %3 = memref.load %arg1[%c3] : memref<257xf32, #tpu.memory_space<smem>>
    %c4 = arith.constant 4 : index
    %4 = memref.load %arg1[%c4] : memref<257xf32, #tpu.memory_space<smem>>
    %c5 = arith.constant 5 : index
    %5 = memref.load %arg1[%c5] : memref<257xf32, #tpu.memory_space<smem>>
    %c6 = arith.constant 6 : index
    %6 = memref.load %arg1[%c6] : memref<257xf32, #tpu.memory_space<smem>>
    %c7 = arith.constant 7 : index
    %7 = memref.load %arg1[%c7] : memref<257xf32, #tpu.memory_space<smem>>
    %c8 = arith.constant 8 : index
    %8 = memref.load %arg1[%c8] : memref<257xf32, #tpu.memory_space<smem>>
    %c9 = arith.constant 9 : index
    %9 = memref.load %arg1[%c9] : memref<257xf32, #tpu.memory_space<smem>>
    %c10 = arith.constant 10 : index
    %10 = memref.load %arg1[%c10] : memref<257xf32, #tpu.memory_space<smem>>
    %c11 = arith.constant 11 : index
    %11 = memref.load %arg1[%c11] : memref<257xf32, #tpu.memory_space<smem>>
    %c12 = arith.constant 12 : index
    %12 = memref.load %arg1[%c12] : memref<257xf32, #tpu.memory_space<smem>>
    %c13 = arith.constant 13 : index
    %13 = memref.load %arg1[%c13] : memref<257xf32, #tpu.memory_space<smem>>
    %c14 = arith.constant 14 : index
    %14 = memref.load %arg1[%c14] : memref<257xf32, #tpu.memory_space<smem>>
    %c15 = arith.constant 15 : index
    %15 = memref.load %arg1[%c15] : memref<257xf32, #tpu.memory_space<smem>>
    %c16 = arith.constant 16 : index
    %16 = memref.load %arg1[%c16] : memref<257xf32, #tpu.memory_space<smem>>
    %c17 = arith.constant 17 : index
    %17 = memref.load %arg1[%c17] : memref<257xf32, #tpu.memory_space<smem>>
    %c18 = arith.constant 18 : index
    %18 = memref.load %arg1[%c18] : memref<257xf32, #tpu.memory_space<smem>>
    %c19 = arith.constant 19 : index
    %19 = memref.load %arg1[%c19] : memref<257xf32, #tpu.memory_space<smem>>
    %c20 = arith.constant 20 : index
    %20 = memref.load %arg1[%c20] : memref<257xf32, #tpu.memory_space<smem>>
    %c21 = arith.constant 21 : index
    %21 = memref.load %arg1[%c21] : memref<257xf32, #tpu.memory_space<smem>>
    %c22 = arith.constant 22 : index
    %22 = memref.load %arg1[%c22] : memref<257xf32, #tpu.memory_space<smem>>
    %c23 = arith.constant 23 : index
    %23 = memref.load %arg1[%c23] : memref<257xf32, #tpu.memory_space<smem>>
    %c24 = arith.constant 24 : index
    %24 = memref.load %arg1[%c24] : memref<257xf32, #tpu.memory_space<smem>>
    %c25 = arith.constant 25 : index
    %25 = memref.load %arg1[%c25] : memref<257xf32, #tpu.memory_space<smem>>
    %c26 = arith.constant 26 : index
    %26 = memref.load %arg1[%c26] : memref<257xf32, #tpu.memory_space<smem>>
    %c27 = arith.constant 27 : index
    %27 = memref.load %arg1[%c27] : memref<257xf32, #tpu.memory_space<smem>>
    %c28 = arith.constant 28 : index
    %28 = memref.load %arg1[%c28] : memref<257xf32, #tpu.memory_space<smem>>
    %c29 = arith.constant 29 : index
    %29 = memref.load %arg1[%c29] : memref<257xf32, #tpu.memory_space<smem>>
    %c30 = arith.constant 30 : index
    %30 = memref.load %arg1[%c30] : memref<257xf32, #tpu.memory_space<smem>>
    %c31 = arith.constant 31 : index
    %31 = memref.load %arg1[%c31] : memref<257xf32, #tpu.memory_space<smem>>
    %c32 = arith.constant 32 : index
    %32 = memref.load %arg1[%c32] : memref<257xf32, #tpu.memory_space<smem>>
    %c33 = arith.constant 33 : index
    %33 = memref.load %arg1[%c33] : memref<257xf32, #tpu.memory_space<smem>>
    %c34 = arith.constant 34 : index
    %34 = memref.load %arg1[%c34] : memref<257xf32, #tpu.memory_space<smem>>
    %c35 = arith.constant 35 : index
    %35 = memref.load %arg1[%c35] : memref<257xf32, #tpu.memory_space<smem>>
    %c36 = arith.constant 36 : index
    %36 = memref.load %arg1[%c36] : memref<257xf32, #tpu.memory_space<smem>>
    %c37 = arith.constant 37 : index
    %37 = memref.load %arg1[%c37] : memref<257xf32, #tpu.memory_space<smem>>
    %c38 = arith.constant 38 : index
    %38 = memref.load %arg1[%c38] : memref<257xf32, #tpu.memory_space<smem>>
    %c39 = arith.constant 39 : index
    %39 = memref.load %arg1[%c39] : memref<257xf32, #tpu.memory_space<smem>>
    %c40 = arith.constant 40 : index
    %40 = memref.load %arg1[%c40] : memref<257xf32, #tpu.memory_space<smem>>
    %c41 = arith.constant 41 : index
    %41 = memref.load %arg1[%c41] : memref<257xf32, #tpu.memory_space<smem>>
    %c42 = arith.constant 42 : index
    %42 = memref.load %arg1[%c42] : memref<257xf32, #tpu.memory_space<smem>>
    %c43 = arith.constant 43 : index
    %43 = memref.load %arg1[%c43] : memref<257xf32, #tpu.memory_space<smem>>
    %c44 = arith.constant 44 : index
    %44 = memref.load %arg1[%c44] : memref<257xf32, #tpu.memory_space<smem>>
    %c45 = arith.constant 45 : index
    %45 = memref.load %arg1[%c45] : memref<257xf32, #tpu.memory_space<smem>>
    %c46 = arith.constant 46 : index
    %46 = memref.load %arg1[%c46] : memref<257xf32, #tpu.memory_space<smem>>
    %c47 = arith.constant 47 : index
    %47 = memref.load %arg1[%c47] : memref<257xf32, #tpu.memory_space<smem>>
    %c48 = arith.constant 48 : index
    %48 = memref.load %arg1[%c48] : memref<257xf32, #tpu.memory_space<smem>>
    %c49 = arith.constant 49 : index
    %49 = memref.load %arg1[%c49] : memref<257xf32, #tpu.memory_space<smem>>
    %c50 = arith.constant 50 : index
    %50 = memref.load %arg1[%c50] : memref<257xf32, #tpu.memory_space<smem>>
    %c51 = arith.constant 51 : index
    %51 = memref.load %arg1[%c51] : memref<257xf32, #tpu.memory_space<smem>>
    %c52 = arith.constant 52 : index
    %52 = memref.load %arg1[%c52] : memref<257xf32, #tpu.memory_space<smem>>
    %c53 = arith.constant 53 : index
    %53 = memref.load %arg1[%c53] : memref<257xf32, #tpu.memory_space<smem>>
    %c54 = arith.constant 54 : index
    %54 = memref.load %arg1[%c54] : memref<257xf32, #tpu.memory_space<smem>>
    %c55 = arith.constant 55 : index
    %55 = memref.load %arg1[%c55] : memref<257xf32, #tpu.memory_space<smem>>
    %c56 = arith.constant 56 : index
    %56 = memref.load %arg1[%c56] : memref<257xf32, #tpu.memory_space<smem>>
    %c57 = arith.constant 57 : index
    %57 = memref.load %arg1[%c57] : memref<257xf32, #tpu.memory_space<smem>>
    %c58 = arith.constant 58 : index
    %58 = memref.load %arg1[%c58] : memref<257xf32, #tpu.memory_space<smem>>
    %c59 = arith.constant 59 : index
    %59 = memref.load %arg1[%c59] : memref<257xf32, #tpu.memory_space<smem>>
    %c60 = arith.constant 60 : index
    %60 = memref.load %arg1[%c60] : memref<257xf32, #tpu.memory_space<smem>>
    %c61 = arith.constant 61 : index
    %61 = memref.load %arg1[%c61] : memref<257xf32, #tpu.memory_space<smem>>
    %c62 = arith.constant 62 : index
    %62 = memref.load %arg1[%c62] : memref<257xf32, #tpu.memory_space<smem>>
    %c63 = arith.constant 63 : index
    %63 = memref.load %arg1[%c63] : memref<257xf32, #tpu.memory_space<smem>>
    %c64 = arith.constant 64 : index
    %64 = memref.load %arg1[%c64] : memref<257xf32, #tpu.memory_space<smem>>
    %c65 = arith.constant 65 : index
    %65 = memref.load %arg1[%c65] : memref<257xf32, #tpu.memory_space<smem>>
    %c66 = arith.constant 66 : index
    %66 = memref.load %arg1[%c66] : memref<257xf32, #tpu.memory_space<smem>>
    %c67 = arith.constant 67 : index
    %67 = memref.load %arg1[%c67] : memref<257xf32, #tpu.memory_space<smem>>
    %c68 = arith.constant 68 : index
    %68 = memref.load %arg1[%c68] : memref<257xf32, #tpu.memory_space<smem>>
    %c69 = arith.constant 69 : index
    %69 = memref.load %arg1[%c69] : memref<257xf32, #tpu.memory_space<smem>>
    %c70 = arith.constant 70 : index
    %70 = memref.load %arg1[%c70] : memref<257xf32, #tpu.memory_space<smem>>
    %c71 = arith.constant 71 : index
    %71 = memref.load %arg1[%c71] : memref<257xf32, #tpu.memory_space<smem>>
    %c72 = arith.constant 72 : index
    %72 = memref.load %arg1[%c72] : memref<257xf32, #tpu.memory_space<smem>>
    %c73 = arith.constant 73 : index
    %73 = memref.load %arg1[%c73] : memref<257xf32, #tpu.memory_space<smem>>
    %c74 = arith.constant 74 : index
    %74 = memref.load %arg1[%c74] : memref<257xf32, #tpu.memory_space<smem>>
    %c75 = arith.constant 75 : index
    %75 = memref.load %arg1[%c75] : memref<257xf32, #tpu.memory_space<smem>>
    %c76 = arith.constant 76 : index
    %76 = memref.load %arg1[%c76] : memref<257xf32, #tpu.memory_space<smem>>
    %c77 = arith.constant 77 : index
    %77 = memref.load %arg1[%c77] : memref<257xf32, #tpu.memory_space<smem>>
    %c78 = arith.constant 78 : index
    %78 = memref.load %arg1[%c78] : memref<257xf32, #tpu.memory_space<smem>>
    %c79 = arith.constant 79 : index
    %79 = memref.load %arg1[%c79] : memref<257xf32, #tpu.memory_space<smem>>
    %c80 = arith.constant 80 : index
    %80 = memref.load %arg1[%c80] : memref<257xf32, #tpu.memory_space<smem>>
    %c81 = arith.constant 81 : index
    %81 = memref.load %arg1[%c81] : memref<257xf32, #tpu.memory_space<smem>>
    %c82 = arith.constant 82 : index
    %82 = memref.load %arg1[%c82] : memref<257xf32, #tpu.memory_space<smem>>
    %c83 = arith.constant 83 : index
    %83 = memref.load %arg1[%c83] : memref<257xf32, #tpu.memory_space<smem>>
    %c84 = arith.constant 84 : index
    %84 = memref.load %arg1[%c84] : memref<257xf32, #tpu.memory_space<smem>>
    %c85 = arith.constant 85 : index
    %85 = memref.load %arg1[%c85] : memref<257xf32, #tpu.memory_space<smem>>
    %c86 = arith.constant 86 : index
    %86 = memref.load %arg1[%c86] : memref<257xf32, #tpu.memory_space<smem>>
    %c87 = arith.constant 87 : index
    %87 = memref.load %arg1[%c87] : memref<257xf32, #tpu.memory_space<smem>>
    %c88 = arith.constant 88 : index
    %88 = memref.load %arg1[%c88] : memref<257xf32, #tpu.memory_space<smem>>
    %c89 = arith.constant 89 : index
    %89 = memref.load %arg1[%c89] : memref<257xf32, #tpu.memory_space<smem>>
    %c90 = arith.constant 90 : index
    %90 = memref.load %arg1[%c90] : memref<257xf32, #tpu.memory_space<smem>>
    %c91 = arith.constant 91 : index
    %91 = memref.load %arg1[%c91] : memref<257xf32, #tpu.memory_space<smem>>
    %c92 = arith.constant 92 : index
    %92 = memref.load %arg1[%c92] : memref<257xf32, #tpu.memory_space<smem>>
    %c93 = arith.constant 93 : index
    %93 = memref.load %arg1[%c93] : memref<257xf32, #tpu.memory_space<smem>>
    %c94 = arith.constant 94 : index
    %94 = memref.load %arg1[%c94] : memref<257xf32, #tpu.memory_space<smem>>
    %c95 = arith.constant 95 : index
    %95 = memref.load %arg1[%c95] : memref<257xf32, #tpu.memory_space<smem>>
    %c96 = arith.constant 96 : index
    %96 = memref.load %arg1[%c96] : memref<257xf32, #tpu.memory_space<smem>>
    %c97 = arith.constant 97 : index
    %97 = memref.load %arg1[%c97] : memref<257xf32, #tpu.memory_space<smem>>
    %c98 = arith.constant 98 : index
    %98 = memref.load %arg1[%c98] : memref<257xf32, #tpu.memory_space<smem>>
    %c99 = arith.constant 99 : index
    %99 = memref.load %arg1[%c99] : memref<257xf32, #tpu.memory_space<smem>>
    %c100 = arith.constant 100 : index
    %100 = memref.load %arg1[%c100] : memref<257xf32, #tpu.memory_space<smem>>
    %c101 = arith.constant 101 : index
    %101 = memref.load %arg1[%c101] : memref<257xf32, #tpu.memory_space<smem>>
    %c102 = arith.constant 102 : index
    %102 = memref.load %arg1[%c102] : memref<257xf32, #tpu.memory_space<smem>>
    %c103 = arith.constant 103 : index
    %103 = memref.load %arg1[%c103] : memref<257xf32, #tpu.memory_space<smem>>
    %c104 = arith.constant 104 : index
    %104 = memref.load %arg1[%c104] : memref<257xf32, #tpu.memory_space<smem>>
    %c105 = arith.constant 105 : index
    %105 = memref.load %arg1[%c105] : memref<257xf32, #tpu.memory_space<smem>>
    %c106 = arith.constant 106 : index
    %106 = memref.load %arg1[%c106] : memref<257xf32, #tpu.memory_space<smem>>
    %c107 = arith.constant 107 : index
    %107 = memref.load %arg1[%c107] : memref<257xf32, #tpu.memory_space<smem>>
    %c108 = arith.constant 108 : index
    %108 = memref.load %arg1[%c108] : memref<257xf32, #tpu.memory_space<smem>>
    %c109 = arith.constant 109 : index
    %109 = memref.load %arg1[%c109] : memref<257xf32, #tpu.memory_space<smem>>
    %c110 = arith.constant 110 : index
    %110 = memref.load %arg1[%c110] : memref<257xf32, #tpu.memory_space<smem>>
    %c111 = arith.constant 111 : index
    %111 = memref.load %arg1[%c111] : memref<257xf32, #tpu.memory_space<smem>>
    %c112 = arith.constant 112 : index
    %112 = memref.load %arg1[%c112] : memref<257xf32, #tpu.memory_space<smem>>
    %c113 = arith.constant 113 : index
    %113 = memref.load %arg1[%c113] : memref<257xf32, #tpu.memory_space<smem>>
    %c114 = arith.constant 114 : index
    %114 = memref.load %arg1[%c114] : memref<257xf32, #tpu.memory_space<smem>>
    %c115 = arith.constant 115 : index
    %115 = memref.load %arg1[%c115] : memref<257xf32, #tpu.memory_space<smem>>
    %c116 = arith.constant 116 : index
    %116 = memref.load %arg1[%c116] : memref<257xf32, #tpu.memory_space<smem>>
    %c117 = arith.constant 117 : index
    %117 = memref.load %arg1[%c117] : memref<257xf32, #tpu.memory_space<smem>>
    %c118 = arith.constant 118 : index
    %118 = memref.load %arg1[%c118] : memref<257xf32, #tpu.memory_space<smem>>
    %c119 = arith.constant 119 : index
    %119 = memref.load %arg1[%c119] : memref<257xf32, #tpu.memory_space<smem>>
    %c120 = arith.constant 120 : index
    %120 = memref.load %arg1[%c120] : memref<257xf32, #tpu.memory_space<smem>>
    %c121 = arith.constant 121 : index
    %121 = memref.load %arg1[%c121] : memref<257xf32, #tpu.memory_space<smem>>
    %c122 = arith.constant 122 : index
    %122 = memref.load %arg1[%c122] : memref<257xf32, #tpu.memory_space<smem>>
    %c123 = arith.constant 123 : index
    %123 = memref.load %arg1[%c123] : memref<257xf32, #tpu.memory_space<smem>>
    %c124 = arith.constant 124 : index
    %124 = memref.load %arg1[%c124] : memref<257xf32, #tpu.memory_space<smem>>
    %c125 = arith.constant 125 : index
    %125 = memref.load %arg1[%c125] : memref<257xf32, #tpu.memory_space<smem>>
    %c126 = arith.constant 126 : index
    %126 = memref.load %arg1[%c126] : memref<257xf32, #tpu.memory_space<smem>>
    %c127 = arith.constant 127 : index
    %127 = memref.load %arg1[%c127] : memref<257xf32, #tpu.memory_space<smem>>
    %c128 = arith.constant 128 : index
    %128 = memref.load %arg1[%c128] : memref<257xf32, #tpu.memory_space<smem>>
    %c129 = arith.constant 129 : index
    %129 = memref.load %arg1[%c129] : memref<257xf32, #tpu.memory_space<smem>>
    %c130 = arith.constant 130 : index
    %130 = memref.load %arg1[%c130] : memref<257xf32, #tpu.memory_space<smem>>
    %c131 = arith.constant 131 : index
    %131 = memref.load %arg1[%c131] : memref<257xf32, #tpu.memory_space<smem>>
    %c132 = arith.constant 132 : index
    %132 = memref.load %arg1[%c132] : memref<257xf32, #tpu.memory_space<smem>>
    %c133 = arith.constant 133 : index
    %133 = memref.load %arg1[%c133] : memref<257xf32, #tpu.memory_space<smem>>
    %c134 = arith.constant 134 : index
    %134 = memref.load %arg1[%c134] : memref<257xf32, #tpu.memory_space<smem>>
    %c135 = arith.constant 135 : index
    %135 = memref.load %arg1[%c135] : memref<257xf32, #tpu.memory_space<smem>>
    %c136 = arith.constant 136 : index
    %136 = memref.load %arg1[%c136] : memref<257xf32, #tpu.memory_space<smem>>
    %c137 = arith.constant 137 : index
    %137 = memref.load %arg1[%c137] : memref<257xf32, #tpu.memory_space<smem>>
    %c138 = arith.constant 138 : index
    %138 = memref.load %arg1[%c138] : memref<257xf32, #tpu.memory_space<smem>>
    %c139 = arith.constant 139 : index
    %139 = memref.load %arg1[%c139] : memref<257xf32, #tpu.memory_space<smem>>
    %c140 = arith.constant 140 : index
    %140 = memref.load %arg1[%c140] : memref<257xf32, #tpu.memory_space<smem>>
    %c141 = arith.constant 141 : index
    %141 = memref.load %arg1[%c141] : memref<257xf32, #tpu.memory_space<smem>>
    %c142 = arith.constant 142 : index
    %142 = memref.load %arg1[%c142] : memref<257xf32, #tpu.memory_space<smem>>
    %c143 = arith.constant 143 : index
    %143 = memref.load %arg1[%c143] : memref<257xf32, #tpu.memory_space<smem>>
    %c144 = arith.constant 144 : index
    %144 = memref.load %arg1[%c144] : memref<257xf32, #tpu.memory_space<smem>>
    %c145 = arith.constant 145 : index
    %145 = memref.load %arg1[%c145] : memref<257xf32, #tpu.memory_space<smem>>
    %c146 = arith.constant 146 : index
    %146 = memref.load %arg1[%c146] : memref<257xf32, #tpu.memory_space<smem>>
    %c147 = arith.constant 147 : index
    %147 = memref.load %arg1[%c147] : memref<257xf32, #tpu.memory_space<smem>>
    %c148 = arith.constant 148 : index
    %148 = memref.load %arg1[%c148] : memref<257xf32, #tpu.memory_space<smem>>
    %c149 = arith.constant 149 : index
    %149 = memref.load %arg1[%c149] : memref<257xf32, #tpu.memory_space<smem>>
    %c150 = arith.constant 150 : index
    %150 = memref.load %arg1[%c150] : memref<257xf32, #tpu.memory_space<smem>>
    %c151 = arith.constant 151 : index
    %151 = memref.load %arg1[%c151] : memref<257xf32, #tpu.memory_space<smem>>
    %c152 = arith.constant 152 : index
    %152 = memref.load %arg1[%c152] : memref<257xf32, #tpu.memory_space<smem>>
    %c153 = arith.constant 153 : index
    %153 = memref.load %arg1[%c153] : memref<257xf32, #tpu.memory_space<smem>>
    %c154 = arith.constant 154 : index
    %154 = memref.load %arg1[%c154] : memref<257xf32, #tpu.memory_space<smem>>
    %c155 = arith.constant 155 : index
    %155 = memref.load %arg1[%c155] : memref<257xf32, #tpu.memory_space<smem>>
    %c156 = arith.constant 156 : index
    %156 = memref.load %arg1[%c156] : memref<257xf32, #tpu.memory_space<smem>>
    %c157 = arith.constant 157 : index
    %157 = memref.load %arg1[%c157] : memref<257xf32, #tpu.memory_space<smem>>
    %c158 = arith.constant 158 : index
    %158 = memref.load %arg1[%c158] : memref<257xf32, #tpu.memory_space<smem>>
    %c159 = arith.constant 159 : index
    %159 = memref.load %arg1[%c159] : memref<257xf32, #tpu.memory_space<smem>>
    %c160 = arith.constant 160 : index
    %160 = memref.load %arg1[%c160] : memref<257xf32, #tpu.memory_space<smem>>
    %c161 = arith.constant 161 : index
    %161 = memref.load %arg1[%c161] : memref<257xf32, #tpu.memory_space<smem>>
    %c162 = arith.constant 162 : index
    %162 = memref.load %arg1[%c162] : memref<257xf32, #tpu.memory_space<smem>>
    %c163 = arith.constant 163 : index
    %163 = memref.load %arg1[%c163] : memref<257xf32, #tpu.memory_space<smem>>
    %c164 = arith.constant 164 : index
    %164 = memref.load %arg1[%c164] : memref<257xf32, #tpu.memory_space<smem>>
    %c165 = arith.constant 165 : index
    %165 = memref.load %arg1[%c165] : memref<257xf32, #tpu.memory_space<smem>>
    %c166 = arith.constant 166 : index
    %166 = memref.load %arg1[%c166] : memref<257xf32, #tpu.memory_space<smem>>
    %c167 = arith.constant 167 : index
    %167 = memref.load %arg1[%c167] : memref<257xf32, #tpu.memory_space<smem>>
    %c168 = arith.constant 168 : index
    %168 = memref.load %arg1[%c168] : memref<257xf32, #tpu.memory_space<smem>>
    %c169 = arith.constant 169 : index
    %169 = memref.load %arg1[%c169] : memref<257xf32, #tpu.memory_space<smem>>
    %c170 = arith.constant 170 : index
    %170 = memref.load %arg1[%c170] : memref<257xf32, #tpu.memory_space<smem>>
    %c171 = arith.constant 171 : index
    %171 = memref.load %arg1[%c171] : memref<257xf32, #tpu.memory_space<smem>>
    %c172 = arith.constant 172 : index
    %172 = memref.load %arg1[%c172] : memref<257xf32, #tpu.memory_space<smem>>
    %c173 = arith.constant 173 : index
    %173 = memref.load %arg1[%c173] : memref<257xf32, #tpu.memory_space<smem>>
    %c174 = arith.constant 174 : index
    %174 = memref.load %arg1[%c174] : memref<257xf32, #tpu.memory_space<smem>>
    %c175 = arith.constant 175 : index
    %175 = memref.load %arg1[%c175] : memref<257xf32, #tpu.memory_space<smem>>
    %c176 = arith.constant 176 : index
    %176 = memref.load %arg1[%c176] : memref<257xf32, #tpu.memory_space<smem>>
    %c177 = arith.constant 177 : index
    %177 = memref.load %arg1[%c177] : memref<257xf32, #tpu.memory_space<smem>>
    %c178 = arith.constant 178 : index
    %178 = memref.load %arg1[%c178] : memref<257xf32, #tpu.memory_space<smem>>
    %c179 = arith.constant 179 : index
    %179 = memref.load %arg1[%c179] : memref<257xf32, #tpu.memory_space<smem>>
    %c180 = arith.constant 180 : index
    %180 = memref.load %arg1[%c180] : memref<257xf32, #tpu.memory_space<smem>>
    %c181 = arith.constant 181 : index
    %181 = memref.load %arg1[%c181] : memref<257xf32, #tpu.memory_space<smem>>
    %c182 = arith.constant 182 : index
    %182 = memref.load %arg1[%c182] : memref<257xf32, #tpu.memory_space<smem>>
    %c183 = arith.constant 183 : index
    %183 = memref.load %arg1[%c183] : memref<257xf32, #tpu.memory_space<smem>>
    %c184 = arith.constant 184 : index
    %184 = memref.load %arg1[%c184] : memref<257xf32, #tpu.memory_space<smem>>
    %c185 = arith.constant 185 : index
    %185 = memref.load %arg1[%c185] : memref<257xf32, #tpu.memory_space<smem>>
    %c186 = arith.constant 186 : index
    %186 = memref.load %arg1[%c186] : memref<257xf32, #tpu.memory_space<smem>>
    %c187 = arith.constant 187 : index
    %187 = memref.load %arg1[%c187] : memref<257xf32, #tpu.memory_space<smem>>
    %c188 = arith.constant 188 : index
    %188 = memref.load %arg1[%c188] : memref<257xf32, #tpu.memory_space<smem>>
    %c189 = arith.constant 189 : index
    %189 = memref.load %arg1[%c189] : memref<257xf32, #tpu.memory_space<smem>>
    %c190 = arith.constant 190 : index
    %190 = memref.load %arg1[%c190] : memref<257xf32, #tpu.memory_space<smem>>
    %c191 = arith.constant 191 : index
    %191 = memref.load %arg1[%c191] : memref<257xf32, #tpu.memory_space<smem>>
    %c192 = arith.constant 192 : index
    %192 = memref.load %arg1[%c192] : memref<257xf32, #tpu.memory_space<smem>>
    %c193 = arith.constant 193 : index
    %193 = memref.load %arg1[%c193] : memref<257xf32, #tpu.memory_space<smem>>
    %c194 = arith.constant 194 : index
    %194 = memref.load %arg1[%c194] : memref<257xf32, #tpu.memory_space<smem>>
    %c195 = arith.constant 195 : index
    %195 = memref.load %arg1[%c195] : memref<257xf32, #tpu.memory_space<smem>>
    %c196 = arith.constant 196 : index
    %196 = memref.load %arg1[%c196] : memref<257xf32, #tpu.memory_space<smem>>
    %c197 = arith.constant 197 : index
    %197 = memref.load %arg1[%c197] : memref<257xf32, #tpu.memory_space<smem>>
    %c198 = arith.constant 198 : index
    %198 = memref.load %arg1[%c198] : memref<257xf32, #tpu.memory_space<smem>>
    %c199 = arith.constant 199 : index
    %199 = memref.load %arg1[%c199] : memref<257xf32, #tpu.memory_space<smem>>
    %c200 = arith.constant 200 : index
    %200 = memref.load %arg1[%c200] : memref<257xf32, #tpu.memory_space<smem>>
    %c201 = arith.constant 201 : index
    %201 = memref.load %arg1[%c201] : memref<257xf32, #tpu.memory_space<smem>>
    %c202 = arith.constant 202 : index
    %202 = memref.load %arg1[%c202] : memref<257xf32, #tpu.memory_space<smem>>
    %c203 = arith.constant 203 : index
    %203 = memref.load %arg1[%c203] : memref<257xf32, #tpu.memory_space<smem>>
    %c204 = arith.constant 204 : index
    %204 = memref.load %arg1[%c204] : memref<257xf32, #tpu.memory_space<smem>>
    %c205 = arith.constant 205 : index
    %205 = memref.load %arg1[%c205] : memref<257xf32, #tpu.memory_space<smem>>
    %c206 = arith.constant 206 : index
    %206 = memref.load %arg1[%c206] : memref<257xf32, #tpu.memory_space<smem>>
    %c207 = arith.constant 207 : index
    %207 = memref.load %arg1[%c207] : memref<257xf32, #tpu.memory_space<smem>>
    %c208 = arith.constant 208 : index
    %208 = memref.load %arg1[%c208] : memref<257xf32, #tpu.memory_space<smem>>
    %c209 = arith.constant 209 : index
    %209 = memref.load %arg1[%c209] : memref<257xf32, #tpu.memory_space<smem>>
    %c210 = arith.constant 210 : index
    %210 = memref.load %arg1[%c210] : memref<257xf32, #tpu.memory_space<smem>>
    %c211 = arith.constant 211 : index
    %211 = memref.load %arg1[%c211] : memref<257xf32, #tpu.memory_space<smem>>
    %c212 = arith.constant 212 : index
    %212 = memref.load %arg1[%c212] : memref<257xf32, #tpu.memory_space<smem>>
    %c213 = arith.constant 213 : index
    %213 = memref.load %arg1[%c213] : memref<257xf32, #tpu.memory_space<smem>>
    %c214 = arith.constant 214 : index
    %214 = memref.load %arg1[%c214] : memref<257xf32, #tpu.memory_space<smem>>
    %c215 = arith.constant 215 : index
    %215 = memref.load %arg1[%c215] : memref<257xf32, #tpu.memory_space<smem>>
    %c216 = arith.constant 216 : index
    %216 = memref.load %arg1[%c216] : memref<257xf32, #tpu.memory_space<smem>>
    %c217 = arith.constant 217 : index
    %217 = memref.load %arg1[%c217] : memref<257xf32, #tpu.memory_space<smem>>
    %c218 = arith.constant 218 : index
    %218 = memref.load %arg1[%c218] : memref<257xf32, #tpu.memory_space<smem>>
    %c219 = arith.constant 219 : index
    %219 = memref.load %arg1[%c219] : memref<257xf32, #tpu.memory_space<smem>>
    %c220 = arith.constant 220 : index
    %220 = memref.load %arg1[%c220] : memref<257xf32, #tpu.memory_space<smem>>
    %c221 = arith.constant 221 : index
    %221 = memref.load %arg1[%c221] : memref<257xf32, #tpu.memory_space<smem>>
    %c222 = arith.constant 222 : index
    %222 = memref.load %arg1[%c222] : memref<257xf32, #tpu.memory_space<smem>>
    %c223 = arith.constant 223 : index
    %223 = memref.load %arg1[%c223] : memref<257xf32, #tpu.memory_space<smem>>
    %c224 = arith.constant 224 : index
    %224 = memref.load %arg1[%c224] : memref<257xf32, #tpu.memory_space<smem>>
    %c225 = arith.constant 225 : index
    %225 = memref.load %arg1[%c225] : memref<257xf32, #tpu.memory_space<smem>>
    %c226 = arith.constant 226 : index
    %226 = memref.load %arg1[%c226] : memref<257xf32, #tpu.memory_space<smem>>
    %c227 = arith.constant 227 : index
    %227 = memref.load %arg1[%c227] : memref<257xf32, #tpu.memory_space<smem>>
    %c228 = arith.constant 228 : index
    %228 = memref.load %arg1[%c228] : memref<257xf32, #tpu.memory_space<smem>>
    %c229 = arith.constant 229 : index
    %229 = memref.load %arg1[%c229] : memref<257xf32, #tpu.memory_space<smem>>
    %c230 = arith.constant 230 : index
    %230 = memref.load %arg1[%c230] : memref<257xf32, #tpu.memory_space<smem>>
    %c231 = arith.constant 231 : index
    %231 = memref.load %arg1[%c231] : memref<257xf32, #tpu.memory_space<smem>>
    %c232 = arith.constant 232 : index
    %232 = memref.load %arg1[%c232] : memref<257xf32, #tpu.memory_space<smem>>
    %c233 = arith.constant 233 : index
    %233 = memref.load %arg1[%c233] : memref<257xf32, #tpu.memory_space<smem>>
    %c234 = arith.constant 234 : index
    %234 = memref.load %arg1[%c234] : memref<257xf32, #tpu.memory_space<smem>>
    %c235 = arith.constant 235 : index
    %235 = memref.load %arg1[%c235] : memref<257xf32, #tpu.memory_space<smem>>
    %c236 = arith.constant 236 : index
    %236 = memref.load %arg1[%c236] : memref<257xf32, #tpu.memory_space<smem>>
    %c237 = arith.constant 237 : index
    %237 = memref.load %arg1[%c237] : memref<257xf32, #tpu.memory_space<smem>>
    %c238 = arith.constant 238 : index
    %238 = memref.load %arg1[%c238] : memref<257xf32, #tpu.memory_space<smem>>
    %c239 = arith.constant 239 : index
    %239 = memref.load %arg1[%c239] : memref<257xf32, #tpu.memory_space<smem>>
    %c240 = arith.constant 240 : index
    %240 = memref.load %arg1[%c240] : memref<257xf32, #tpu.memory_space<smem>>
    %c241 = arith.constant 241 : index
    %241 = memref.load %arg1[%c241] : memref<257xf32, #tpu.memory_space<smem>>
    %c242 = arith.constant 242 : index
    %242 = memref.load %arg1[%c242] : memref<257xf32, #tpu.memory_space<smem>>
    %c243 = arith.constant 243 : index
    %243 = memref.load %arg1[%c243] : memref<257xf32, #tpu.memory_space<smem>>
    %c244 = arith.constant 244 : index
    %244 = memref.load %arg1[%c244] : memref<257xf32, #tpu.memory_space<smem>>
    %c245 = arith.constant 245 : index
    %245 = memref.load %arg1[%c245] : memref<257xf32, #tpu.memory_space<smem>>
    %c246 = arith.constant 246 : index
    %246 = memref.load %arg1[%c246] : memref<257xf32, #tpu.memory_space<smem>>
    %c247 = arith.constant 247 : index
    %247 = memref.load %arg1[%c247] : memref<257xf32, #tpu.memory_space<smem>>
    %c248 = arith.constant 248 : index
    %248 = memref.load %arg1[%c248] : memref<257xf32, #tpu.memory_space<smem>>
    %c249 = arith.constant 249 : index
    %249 = memref.load %arg1[%c249] : memref<257xf32, #tpu.memory_space<smem>>
    %c250 = arith.constant 250 : index
    %250 = memref.load %arg1[%c250] : memref<257xf32, #tpu.memory_space<smem>>
    %c251 = arith.constant 251 : index
    %251 = memref.load %arg1[%c251] : memref<257xf32, #tpu.memory_space<smem>>
    %c252 = arith.constant 252 : index
    %252 = memref.load %arg1[%c252] : memref<257xf32, #tpu.memory_space<smem>>
    %c253 = arith.constant 253 : index
    %253 = memref.load %arg1[%c253] : memref<257xf32, #tpu.memory_space<smem>>
    %c254 = arith.constant 254 : index
    %254 = memref.load %arg1[%c254] : memref<257xf32, #tpu.memory_space<smem>>
    %c255 = arith.constant 255 : index
    %255 = memref.load %arg1[%c255] : memref<257xf32, #tpu.memory_space<smem>>
    %c256 = arith.constant 256 : index
    %256 = memref.load %arg1[%c256] : memref<257xf32, #tpu.memory_space<smem>>
    %c0_0 = arith.constant 0 : index
    %c0_1 = arith.constant 0 : index
    %c0_2 = arith.constant 0 : index
    %257 = vector.load %arg2[%c0_0, %c0_1, %c0_2] : memref<3x8x128xf32, #tpu.memory_space<vmem>>, vector<1x8x128xf32>
    %258 = vector.shape_cast %257 : vector<1x8x128xf32> to vector<8x128xf32>
    %c1_3 = arith.constant 1 : index
    %c0_4 = arith.constant 0 : index
    %c0_5 = arith.constant 0 : index
    %259 = vector.load %arg2[%c1_3, %c0_4, %c0_5] : memref<3x8x128xf32, #tpu.memory_space<vmem>>, vector<1x8x128xf32>
    %260 = vector.shape_cast %259 : vector<1x8x128xf32> to vector<8x128xf32>
    %c2_6 = arith.constant 2 : index
    %c0_7 = arith.constant 0 : index
    %c0_8 = arith.constant 0 : index
    %261 = vector.load %arg2[%c2_6, %c0_7, %c0_8] : memref<3x8x128xf32, #tpu.memory_space<vmem>>, vector<1x8x128xf32>
    %262 = vector.shape_cast %261 : vector<1x8x128xf32> to vector<8x128xf32>
    %263 = vector.broadcast %0 : f32 to vector<8x128xf32>
    %264 = arith.mulf %258, %263 : vector<8x128xf32>
    %265 = vector.broadcast %8 : f32 to vector<8x128xf32>
    %266 = arith.mulf %260, %265 : vector<8x128xf32>
    %267 = arith.addf %264, %266 : vector<8x128xf32>
    %268 = vector.broadcast %16 : f32 to vector<8x128xf32>
    %269 = arith.mulf %262, %268 : vector<8x128xf32>
    %270 = arith.addf %267, %269 : vector<8x128xf32>
    %271 = vector.broadcast %24 : f32 to vector<8x128xf32>
    %272 = arith.addf %270, %271 : vector<8x128xf32>
    %cst = arith.constant 0.000000e+00 : f32
    %273 = vector.broadcast %cst : f32 to vector<8x128xf32>
    %274 = arith.maximumf %272, %273 : vector<8x128xf32>
    %275 = vector.broadcast %1 : f32 to vector<8x128xf32>
    %276 = arith.mulf %258, %275 : vector<8x128xf32>
    %277 = vector.broadcast %9 : f32 to vector<8x128xf32>
    %278 = arith.mulf %260, %277 : vector<8x128xf32>
    %279 = arith.addf %276, %278 : vector<8x128xf32>
    %280 = vector.broadcast %17 : f32 to vector<8x128xf32>
    %281 = arith.mulf %262, %280 : vector<8x128xf32>
    %282 = arith.addf %279, %281 : vector<8x128xf32>
    %283 = vector.broadcast %25 : f32 to vector<8x128xf32>
    %284 = arith.addf %282, %283 : vector<8x128xf32>
    %cst_9 = arith.constant 0.000000e+00 : f32
    %285 = vector.broadcast %cst_9 : f32 to vector<8x128xf32>
    %286 = arith.maximumf %284, %285 : vector<8x128xf32>
    %287 = vector.broadcast %2 : f32 to vector<8x128xf32>
    %288 = arith.mulf %258, %287 : vector<8x128xf32>
    %289 = vector.broadcast %10 : f32 to vector<8x128xf32>
    %290 = arith.mulf %260, %289 : vector<8x128xf32>
    %291 = arith.addf %288, %290 : vector<8x128xf32>
    %292 = vector.broadcast %18 : f32 to vector<8x128xf32>
    %293 = arith.mulf %262, %292 : vector<8x128xf32>
    %294 = arith.addf %291, %293 : vector<8x128xf32>
    %295 = vector.broadcast %26 : f32 to vector<8x128xf32>
    %296 = arith.addf %294, %295 : vector<8x128xf32>
    %cst_10 = arith.constant 0.000000e+00 : f32
    %297 = vector.broadcast %cst_10 : f32 to vector<8x128xf32>
    %298 = arith.maximumf %296, %297 : vector<8x128xf32>
    %299 = vector.broadcast %3 : f32 to vector<8x128xf32>
    %300 = arith.mulf %258, %299 : vector<8x128xf32>
    %301 = vector.broadcast %11 : f32 to vector<8x128xf32>
    %302 = arith.mulf %260, %301 : vector<8x128xf32>
    %303 = arith.addf %300, %302 : vector<8x128xf32>
    %304 = vector.broadcast %19 : f32 to vector<8x128xf32>
    %305 = arith.mulf %262, %304 : vector<8x128xf32>
    %306 = arith.addf %303, %305 : vector<8x128xf32>
    %307 = vector.broadcast %27 : f32 to vector<8x128xf32>
    %308 = arith.addf %306, %307 : vector<8x128xf32>
    %cst_11 = arith.constant 0.000000e+00 : f32
    %309 = vector.broadcast %cst_11 : f32 to vector<8x128xf32>
    %310 = arith.maximumf %308, %309 : vector<8x128xf32>
    %311 = vector.broadcast %4 : f32 to vector<8x128xf32>
    %312 = arith.mulf %258, %311 : vector<8x128xf32>
    %313 = vector.broadcast %12 : f32 to vector<8x128xf32>
    %314 = arith.mulf %260, %313 : vector<8x128xf32>
    %315 = arith.addf %312, %314 : vector<8x128xf32>
    %316 = vector.broadcast %20 : f32 to vector<8x128xf32>
    %317 = arith.mulf %262, %316 : vector<8x128xf32>
    %318 = arith.addf %315, %317 : vector<8x128xf32>
    %319 = vector.broadcast %28 : f32 to vector<8x128xf32>
    %320 = arith.addf %318, %319 : vector<8x128xf32>
    %cst_12 = arith.constant 0.000000e+00 : f32
    %321 = vector.broadcast %cst_12 : f32 to vector<8x128xf32>
    %322 = arith.maximumf %320, %321 : vector<8x128xf32>
    %323 = vector.broadcast %5 : f32 to vector<8x128xf32>
    %324 = arith.mulf %258, %323 : vector<8x128xf32>
    %325 = vector.broadcast %13 : f32 to vector<8x128xf32>
    %326 = arith.mulf %260, %325 : vector<8x128xf32>
    %327 = arith.addf %324, %326 : vector<8x128xf32>
    %328 = vector.broadcast %21 : f32 to vector<8x128xf32>
    %329 = arith.mulf %262, %328 : vector<8x128xf32>
    %330 = arith.addf %327, %329 : vector<8x128xf32>
    %331 = vector.broadcast %29 : f32 to vector<8x128xf32>
    %332 = arith.addf %330, %331 : vector<8x128xf32>
    %cst_13 = arith.constant 0.000000e+00 : f32
    %333 = vector.broadcast %cst_13 : f32 to vector<8x128xf32>
    %334 = arith.maximumf %332, %333 : vector<8x128xf32>
    %335 = vector.broadcast %6 : f32 to vector<8x128xf32>
    %336 = arith.mulf %258, %335 : vector<8x128xf32>
    %337 = vector.broadcast %14 : f32 to vector<8x128xf32>
    %338 = arith.mulf %260, %337 : vector<8x128xf32>
    %339 = arith.addf %336, %338 : vector<8x128xf32>
    %340 = vector.broadcast %22 : f32 to vector<8x128xf32>
    %341 = arith.mulf %262, %340 : vector<8x128xf32>
    %342 = arith.addf %339, %341 : vector<8x128xf32>
    %343 = vector.broadcast %30 : f32 to vector<8x128xf32>
    %344 = arith.addf %342, %343 : vector<8x128xf32>
    %cst_14 = arith.constant 0.000000e+00 : f32
    %345 = vector.broadcast %cst_14 : f32 to vector<8x128xf32>
    %346 = arith.maximumf %344, %345 : vector<8x128xf32>
    %347 = vector.broadcast %7 : f32 to vector<8x128xf32>
    %348 = arith.mulf %258, %347 : vector<8x128xf32>
    %349 = vector.broadcast %15 : f32 to vector<8x128xf32>
    %350 = arith.mulf %260, %349 : vector<8x128xf32>
    %351 = arith.addf %348, %350 : vector<8x128xf32>
    %352 = vector.broadcast %23 : f32 to vector<8x128xf32>
    %353 = arith.mulf %262, %352 : vector<8x128xf32>
    %354 = arith.addf %351, %353 : vector<8x128xf32>
    %355 = vector.broadcast %31 : f32 to vector<8x128xf32>
    %356 = arith.addf %354, %355 : vector<8x128xf32>
    %cst_15 = arith.constant 0.000000e+00 : f32
    %357 = vector.broadcast %cst_15 : f32 to vector<8x128xf32>
    %358 = arith.maximumf %356, %357 : vector<8x128xf32>
    %359 = vector.broadcast %32 : f32 to vector<8x128xf32>
    %360 = arith.mulf %274, %359 : vector<8x128xf32>
    %361 = vector.broadcast %40 : f32 to vector<8x128xf32>
    %362 = arith.mulf %286, %361 : vector<8x128xf32>
    %363 = arith.addf %360, %362 : vector<8x128xf32>
    %364 = vector.broadcast %48 : f32 to vector<8x128xf32>
    %365 = arith.mulf %298, %364 : vector<8x128xf32>
    %366 = arith.addf %363, %365 : vector<8x128xf32>
    %367 = vector.broadcast %56 : f32 to vector<8x128xf32>
    %368 = arith.mulf %310, %367 : vector<8x128xf32>
    %369 = arith.addf %366, %368 : vector<8x128xf32>
    %370 = vector.broadcast %64 : f32 to vector<8x128xf32>
    %371 = arith.mulf %322, %370 : vector<8x128xf32>
    %372 = arith.addf %369, %371 : vector<8x128xf32>
    %373 = vector.broadcast %72 : f32 to vector<8x128xf32>
    %374 = arith.mulf %334, %373 : vector<8x128xf32>
    %375 = arith.addf %372, %374 : vector<8x128xf32>
    %376 = vector.broadcast %80 : f32 to vector<8x128xf32>
    %377 = arith.mulf %346, %376 : vector<8x128xf32>
    %378 = arith.addf %375, %377 : vector<8x128xf32>
    %379 = vector.broadcast %88 : f32 to vector<8x128xf32>
    %380 = arith.mulf %358, %379 : vector<8x128xf32>
    %381 = arith.addf %378, %380 : vector<8x128xf32>
    %382 = vector.broadcast %96 : f32 to vector<8x128xf32>
    %383 = arith.addf %381, %382 : vector<8x128xf32>
    %cst_16 = arith.constant 0.000000e+00 : f32
    %384 = vector.broadcast %cst_16 : f32 to vector<8x128xf32>
    %385 = arith.maximumf %383, %384 : vector<8x128xf32>
    %386 = vector.broadcast %33 : f32 to vector<8x128xf32>
    %387 = arith.mulf %274, %386 : vector<8x128xf32>
    %388 = vector.broadcast %41 : f32 to vector<8x128xf32>
    %389 = arith.mulf %286, %388 : vector<8x128xf32>
    %390 = arith.addf %387, %389 : vector<8x128xf32>
    %391 = vector.broadcast %49 : f32 to vector<8x128xf32>
    %392 = arith.mulf %298, %391 : vector<8x128xf32>
    %393 = arith.addf %390, %392 : vector<8x128xf32>
    %394 = vector.broadcast %57 : f32 to vector<8x128xf32>
    %395 = arith.mulf %310, %394 : vector<8x128xf32>
    %396 = arith.addf %393, %395 : vector<8x128xf32>
    %397 = vector.broadcast %65 : f32 to vector<8x128xf32>
    %398 = arith.mulf %322, %397 : vector<8x128xf32>
    %399 = arith.addf %396, %398 : vector<8x128xf32>
    %400 = vector.broadcast %73 : f32 to vector<8x128xf32>
    %401 = arith.mulf %334, %400 : vector<8x128xf32>
    %402 = arith.addf %399, %401 : vector<8x128xf32>
    %403 = vector.broadcast %81 : f32 to vector<8x128xf32>
    %404 = arith.mulf %346, %403 : vector<8x128xf32>
    %405 = arith.addf %402, %404 : vector<8x128xf32>
    %406 = vector.broadcast %89 : f32 to vector<8x128xf32>
    %407 = arith.mulf %358, %406 : vector<8x128xf32>
    %408 = arith.addf %405, %407 : vector<8x128xf32>
    %409 = vector.broadcast %97 : f32 to vector<8x128xf32>
    %410 = arith.addf %408, %409 : vector<8x128xf32>
    %cst_17 = arith.constant 0.000000e+00 : f32
    %411 = vector.broadcast %cst_17 : f32 to vector<8x128xf32>
    %412 = arith.maximumf %410, %411 : vector<8x128xf32>
    %413 = vector.broadcast %34 : f32 to vector<8x128xf32>
    %414 = arith.mulf %274, %413 : vector<8x128xf32>
    %415 = vector.broadcast %42 : f32 to vector<8x128xf32>
    %416 = arith.mulf %286, %415 : vector<8x128xf32>
    %417 = arith.addf %414, %416 : vector<8x128xf32>
    %418 = vector.broadcast %50 : f32 to vector<8x128xf32>
    %419 = arith.mulf %298, %418 : vector<8x128xf32>
    %420 = arith.addf %417, %419 : vector<8x128xf32>
    %421 = vector.broadcast %58 : f32 to vector<8x128xf32>
    %422 = arith.mulf %310, %421 : vector<8x128xf32>
    %423 = arith.addf %420, %422 : vector<8x128xf32>
    %424 = vector.broadcast %66 : f32 to vector<8x128xf32>
    %425 = arith.mulf %322, %424 : vector<8x128xf32>
    %426 = arith.addf %423, %425 : vector<8x128xf32>
    %427 = vector.broadcast %74 : f32 to vector<8x128xf32>
    %428 = arith.mulf %334, %427 : vector<8x128xf32>
    %429 = arith.addf %426, %428 : vector<8x128xf32>
    %430 = vector.broadcast %82 : f32 to vector<8x128xf32>
    %431 = arith.mulf %346, %430 : vector<8x128xf32>
    %432 = arith.addf %429, %431 : vector<8x128xf32>
    %433 = vector.broadcast %90 : f32 to vector<8x128xf32>
    %434 = arith.mulf %358, %433 : vector<8x128xf32>
    %435 = arith.addf %432, %434 : vector<8x128xf32>
    %436 = vector.broadcast %98 : f32 to vector<8x128xf32>
    %437 = arith.addf %435, %436 : vector<8x128xf32>
    %cst_18 = arith.constant 0.000000e+00 : f32
    %438 = vector.broadcast %cst_18 : f32 to vector<8x128xf32>
    %439 = arith.maximumf %437, %438 : vector<8x128xf32>
    %440 = vector.broadcast %35 : f32 to vector<8x128xf32>
    %441 = arith.mulf %274, %440 : vector<8x128xf32>
    %442 = vector.broadcast %43 : f32 to vector<8x128xf32>
    %443 = arith.mulf %286, %442 : vector<8x128xf32>
    %444 = arith.addf %441, %443 : vector<8x128xf32>
    %445 = vector.broadcast %51 : f32 to vector<8x128xf32>
    %446 = arith.mulf %298, %445 : vector<8x128xf32>
    %447 = arith.addf %444, %446 : vector<8x128xf32>
    %448 = vector.broadcast %59 : f32 to vector<8x128xf32>
    %449 = arith.mulf %310, %448 : vector<8x128xf32>
    %450 = arith.addf %447, %449 : vector<8x128xf32>
    %451 = vector.broadcast %67 : f32 to vector<8x128xf32>
    %452 = arith.mulf %322, %451 : vector<8x128xf32>
    %453 = arith.addf %450, %452 : vector<8x128xf32>
    %454 = vector.broadcast %75 : f32 to vector<8x128xf32>
    %455 = arith.mulf %334, %454 : vector<8x128xf32>
    %456 = arith.addf %453, %455 : vector<8x128xf32>
    %457 = vector.broadcast %83 : f32 to vector<8x128xf32>
    %458 = arith.mulf %346, %457 : vector<8x128xf32>
    %459 = arith.addf %456, %458 : vector<8x128xf32>
    %460 = vector.broadcast %91 : f32 to vector<8x128xf32>
    %461 = arith.mulf %358, %460 : vector<8x128xf32>
    %462 = arith.addf %459, %461 : vector<8x128xf32>
    %463 = vector.broadcast %99 : f32 to vector<8x128xf32>
    %464 = arith.addf %462, %463 : vector<8x128xf32>
    %cst_19 = arith.constant 0.000000e+00 : f32
    %465 = vector.broadcast %cst_19 : f32 to vector<8x128xf32>
    %466 = arith.maximumf %464, %465 : vector<8x128xf32>
    %467 = vector.broadcast %36 : f32 to vector<8x128xf32>
    %468 = arith.mulf %274, %467 : vector<8x128xf32>
    %469 = vector.broadcast %44 : f32 to vector<8x128xf32>
    %470 = arith.mulf %286, %469 : vector<8x128xf32>
    %471 = arith.addf %468, %470 : vector<8x128xf32>
    %472 = vector.broadcast %52 : f32 to vector<8x128xf32>
    %473 = arith.mulf %298, %472 : vector<8x128xf32>
    %474 = arith.addf %471, %473 : vector<8x128xf32>
    %475 = vector.broadcast %60 : f32 to vector<8x128xf32>
    %476 = arith.mulf %310, %475 : vector<8x128xf32>
    %477 = arith.addf %474, %476 : vector<8x128xf32>
    %478 = vector.broadcast %68 : f32 to vector<8x128xf32>
    %479 = arith.mulf %322, %478 : vector<8x128xf32>
    %480 = arith.addf %477, %479 : vector<8x128xf32>
    %481 = vector.broadcast %76 : f32 to vector<8x128xf32>
    %482 = arith.mulf %334, %481 : vector<8x128xf32>
    %483 = arith.addf %480, %482 : vector<8x128xf32>
    %484 = vector.broadcast %84 : f32 to vector<8x128xf32>
    %485 = arith.mulf %346, %484 : vector<8x128xf32>
    %486 = arith.addf %483, %485 : vector<8x128xf32>
    %487 = vector.broadcast %92 : f32 to vector<8x128xf32>
    %488 = arith.mulf %358, %487 : vector<8x128xf32>
    %489 = arith.addf %486, %488 : vector<8x128xf32>
    %490 = vector.broadcast %100 : f32 to vector<8x128xf32>
    %491 = arith.addf %489, %490 : vector<8x128xf32>
    %cst_20 = arith.constant 0.000000e+00 : f32
    %492 = vector.broadcast %cst_20 : f32 to vector<8x128xf32>
    %493 = arith.maximumf %491, %492 : vector<8x128xf32>
    %494 = vector.broadcast %37 : f32 to vector<8x128xf32>
    %495 = arith.mulf %274, %494 : vector<8x128xf32>
    %496 = vector.broadcast %45 : f32 to vector<8x128xf32>
    %497 = arith.mulf %286, %496 : vector<8x128xf32>
    %498 = arith.addf %495, %497 : vector<8x128xf32>
    %499 = vector.broadcast %53 : f32 to vector<8x128xf32>
    %500 = arith.mulf %298, %499 : vector<8x128xf32>
    %501 = arith.addf %498, %500 : vector<8x128xf32>
    %502 = vector.broadcast %61 : f32 to vector<8x128xf32>
    %503 = arith.mulf %310, %502 : vector<8x128xf32>
    %504 = arith.addf %501, %503 : vector<8x128xf32>
    %505 = vector.broadcast %69 : f32 to vector<8x128xf32>
    %506 = arith.mulf %322, %505 : vector<8x128xf32>
    %507 = arith.addf %504, %506 : vector<8x128xf32>
    %508 = vector.broadcast %77 : f32 to vector<8x128xf32>
    %509 = arith.mulf %334, %508 : vector<8x128xf32>
    %510 = arith.addf %507, %509 : vector<8x128xf32>
    %511 = vector.broadcast %85 : f32 to vector<8x128xf32>
    %512 = arith.mulf %346, %511 : vector<8x128xf32>
    %513 = arith.addf %510, %512 : vector<8x128xf32>
    %514 = vector.broadcast %93 : f32 to vector<8x128xf32>
    %515 = arith.mulf %358, %514 : vector<8x128xf32>
    %516 = arith.addf %513, %515 : vector<8x128xf32>
    %517 = vector.broadcast %101 : f32 to vector<8x128xf32>
    %518 = arith.addf %516, %517 : vector<8x128xf32>
    %cst_21 = arith.constant 0.000000e+00 : f32
    %519 = vector.broadcast %cst_21 : f32 to vector<8x128xf32>
    %520 = arith.maximumf %518, %519 : vector<8x128xf32>
    %521 = vector.broadcast %38 : f32 to vector<8x128xf32>
    %522 = arith.mulf %274, %521 : vector<8x128xf32>
    %523 = vector.broadcast %46 : f32 to vector<8x128xf32>
    %524 = arith.mulf %286, %523 : vector<8x128xf32>
    %525 = arith.addf %522, %524 : vector<8x128xf32>
    %526 = vector.broadcast %54 : f32 to vector<8x128xf32>
    %527 = arith.mulf %298, %526 : vector<8x128xf32>
    %528 = arith.addf %525, %527 : vector<8x128xf32>
    %529 = vector.broadcast %62 : f32 to vector<8x128xf32>
    %530 = arith.mulf %310, %529 : vector<8x128xf32>
    %531 = arith.addf %528, %530 : vector<8x128xf32>
    %532 = vector.broadcast %70 : f32 to vector<8x128xf32>
    %533 = arith.mulf %322, %532 : vector<8x128xf32>
    %534 = arith.addf %531, %533 : vector<8x128xf32>
    %535 = vector.broadcast %78 : f32 to vector<8x128xf32>
    %536 = arith.mulf %334, %535 : vector<8x128xf32>
    %537 = arith.addf %534, %536 : vector<8x128xf32>
    %538 = vector.broadcast %86 : f32 to vector<8x128xf32>
    %539 = arith.mulf %346, %538 : vector<8x128xf32>
    %540 = arith.addf %537, %539 : vector<8x128xf32>
    %541 = vector.broadcast %94 : f32 to vector<8x128xf32>
    %542 = arith.mulf %358, %541 : vector<8x128xf32>
    %543 = arith.addf %540, %542 : vector<8x128xf32>
    %544 = vector.broadcast %102 : f32 to vector<8x128xf32>
    %545 = arith.addf %543, %544 : vector<8x128xf32>
    %cst_22 = arith.constant 0.000000e+00 : f32
    %546 = vector.broadcast %cst_22 : f32 to vector<8x128xf32>
    %547 = arith.maximumf %545, %546 : vector<8x128xf32>
    %548 = vector.broadcast %39 : f32 to vector<8x128xf32>
    %549 = arith.mulf %274, %548 : vector<8x128xf32>
    %550 = vector.broadcast %47 : f32 to vector<8x128xf32>
    %551 = arith.mulf %286, %550 : vector<8x128xf32>
    %552 = arith.addf %549, %551 : vector<8x128xf32>
    %553 = vector.broadcast %55 : f32 to vector<8x128xf32>
    %554 = arith.mulf %298, %553 : vector<8x128xf32>
    %555 = arith.addf %552, %554 : vector<8x128xf32>
    %556 = vector.broadcast %63 : f32 to vector<8x128xf32>
    %557 = arith.mulf %310, %556 : vector<8x128xf32>
    %558 = arith.addf %555, %557 : vector<8x128xf32>
    %559 = vector.broadcast %71 : f32 to vector<8x128xf32>
    %560 = arith.mulf %322, %559 : vector<8x128xf32>
    %561 = arith.addf %558, %560 : vector<8x128xf32>
    %562 = vector.broadcast %79 : f32 to vector<8x128xf32>
    %563 = arith.mulf %334, %562 : vector<8x128xf32>
    %564 = arith.addf %561, %563 : vector<8x128xf32>
    %565 = vector.broadcast %87 : f32 to vector<8x128xf32>
    %566 = arith.mulf %346, %565 : vector<8x128xf32>
    %567 = arith.addf %564, %566 : vector<8x128xf32>
    %568 = vector.broadcast %95 : f32 to vector<8x128xf32>
    %569 = arith.mulf %358, %568 : vector<8x128xf32>
    %570 = arith.addf %567, %569 : vector<8x128xf32>
    %571 = vector.broadcast %103 : f32 to vector<8x128xf32>
    %572 = arith.addf %570, %571 : vector<8x128xf32>
    %cst_23 = arith.constant 0.000000e+00 : f32
    %573 = vector.broadcast %cst_23 : f32 to vector<8x128xf32>
    %574 = arith.maximumf %572, %573 : vector<8x128xf32>
    %575 = vector.broadcast %104 : f32 to vector<8x128xf32>
    %576 = arith.mulf %385, %575 : vector<8x128xf32>
    %577 = vector.broadcast %112 : f32 to vector<8x128xf32>
    %578 = arith.mulf %412, %577 : vector<8x128xf32>
    %579 = arith.addf %576, %578 : vector<8x128xf32>
    %580 = vector.broadcast %120 : f32 to vector<8x128xf32>
    %581 = arith.mulf %439, %580 : vector<8x128xf32>
    %582 = arith.addf %579, %581 : vector<8x128xf32>
    %583 = vector.broadcast %128 : f32 to vector<8x128xf32>
    %584 = arith.mulf %466, %583 : vector<8x128xf32>
    %585 = arith.addf %582, %584 : vector<8x128xf32>
    %586 = vector.broadcast %136 : f32 to vector<8x128xf32>
    %587 = arith.mulf %493, %586 : vector<8x128xf32>
    %588 = arith.addf %585, %587 : vector<8x128xf32>
    %589 = vector.broadcast %144 : f32 to vector<8x128xf32>
    %590 = arith.mulf %520, %589 : vector<8x128xf32>
    %591 = arith.addf %588, %590 : vector<8x128xf32>
    %592 = vector.broadcast %152 : f32 to vector<8x128xf32>
    %593 = arith.mulf %547, %592 : vector<8x128xf32>
    %594 = arith.addf %591, %593 : vector<8x128xf32>
    %595 = vector.broadcast %160 : f32 to vector<8x128xf32>
    %596 = arith.mulf %574, %595 : vector<8x128xf32>
    %597 = arith.addf %594, %596 : vector<8x128xf32>
    %598 = vector.broadcast %168 : f32 to vector<8x128xf32>
    %599 = arith.addf %597, %598 : vector<8x128xf32>
    %cst_24 = arith.constant 0.000000e+00 : f32
    %600 = vector.broadcast %cst_24 : f32 to vector<8x128xf32>
    %601 = arith.maximumf %599, %600 : vector<8x128xf32>
    %602 = vector.broadcast %105 : f32 to vector<8x128xf32>
    %603 = arith.mulf %385, %602 : vector<8x128xf32>
    %604 = vector.broadcast %113 : f32 to vector<8x128xf32>
    %605 = arith.mulf %412, %604 : vector<8x128xf32>
    %606 = arith.addf %603, %605 : vector<8x128xf32>
    %607 = vector.broadcast %121 : f32 to vector<8x128xf32>
    %608 = arith.mulf %439, %607 : vector<8x128xf32>
    %609 = arith.addf %606, %608 : vector<8x128xf32>
    %610 = vector.broadcast %129 : f32 to vector<8x128xf32>
    %611 = arith.mulf %466, %610 : vector<8x128xf32>
    %612 = arith.addf %609, %611 : vector<8x128xf32>
    %613 = vector.broadcast %137 : f32 to vector<8x128xf32>
    %614 = arith.mulf %493, %613 : vector<8x128xf32>
    %615 = arith.addf %612, %614 : vector<8x128xf32>
    %616 = vector.broadcast %145 : f32 to vector<8x128xf32>
    %617 = arith.mulf %520, %616 : vector<8x128xf32>
    %618 = arith.addf %615, %617 : vector<8x128xf32>
    %619 = vector.broadcast %153 : f32 to vector<8x128xf32>
    %620 = arith.mulf %547, %619 : vector<8x128xf32>
    %621 = arith.addf %618, %620 : vector<8x128xf32>
    %622 = vector.broadcast %161 : f32 to vector<8x128xf32>
    %623 = arith.mulf %574, %622 : vector<8x128xf32>
    %624 = arith.addf %621, %623 : vector<8x128xf32>
    %625 = vector.broadcast %169 : f32 to vector<8x128xf32>
    %626 = arith.addf %624, %625 : vector<8x128xf32>
    %cst_25 = arith.constant 0.000000e+00 : f32
    %627 = vector.broadcast %cst_25 : f32 to vector<8x128xf32>
    %628 = arith.maximumf %626, %627 : vector<8x128xf32>
    %629 = vector.broadcast %106 : f32 to vector<8x128xf32>
    %630 = arith.mulf %385, %629 : vector<8x128xf32>
    %631 = vector.broadcast %114 : f32 to vector<8x128xf32>
    %632 = arith.mulf %412, %631 : vector<8x128xf32>
    %633 = arith.addf %630, %632 : vector<8x128xf32>
    %634 = vector.broadcast %122 : f32 to vector<8x128xf32>
    %635 = arith.mulf %439, %634 : vector<8x128xf32>
    %636 = arith.addf %633, %635 : vector<8x128xf32>
    %637 = vector.broadcast %130 : f32 to vector<8x128xf32>
    %638 = arith.mulf %466, %637 : vector<8x128xf32>
    %639 = arith.addf %636, %638 : vector<8x128xf32>
    %640 = vector.broadcast %138 : f32 to vector<8x128xf32>
    %641 = arith.mulf %493, %640 : vector<8x128xf32>
    %642 = arith.addf %639, %641 : vector<8x128xf32>
    %643 = vector.broadcast %146 : f32 to vector<8x128xf32>
    %644 = arith.mulf %520, %643 : vector<8x128xf32>
    %645 = arith.addf %642, %644 : vector<8x128xf32>
    %646 = vector.broadcast %154 : f32 to vector<8x128xf32>
    %647 = arith.mulf %547, %646 : vector<8x128xf32>
    %648 = arith.addf %645, %647 : vector<8x128xf32>
    %649 = vector.broadcast %162 : f32 to vector<8x128xf32>
    %650 = arith.mulf %574, %649 : vector<8x128xf32>
    %651 = arith.addf %648, %650 : vector<8x128xf32>
    %652 = vector.broadcast %170 : f32 to vector<8x128xf32>
    %653 = arith.addf %651, %652 : vector<8x128xf32>
    %cst_26 = arith.constant 0.000000e+00 : f32
    %654 = vector.broadcast %cst_26 : f32 to vector<8x128xf32>
    %655 = arith.maximumf %653, %654 : vector<8x128xf32>
    %656 = vector.broadcast %107 : f32 to vector<8x128xf32>
    %657 = arith.mulf %385, %656 : vector<8x128xf32>
    %658 = vector.broadcast %115 : f32 to vector<8x128xf32>
    %659 = arith.mulf %412, %658 : vector<8x128xf32>
    %660 = arith.addf %657, %659 : vector<8x128xf32>
    %661 = vector.broadcast %123 : f32 to vector<8x128xf32>
    %662 = arith.mulf %439, %661 : vector<8x128xf32>
    %663 = arith.addf %660, %662 : vector<8x128xf32>
    %664 = vector.broadcast %131 : f32 to vector<8x128xf32>
    %665 = arith.mulf %466, %664 : vector<8x128xf32>
    %666 = arith.addf %663, %665 : vector<8x128xf32>
    %667 = vector.broadcast %139 : f32 to vector<8x128xf32>
    %668 = arith.mulf %493, %667 : vector<8x128xf32>
    %669 = arith.addf %666, %668 : vector<8x128xf32>
    %670 = vector.broadcast %147 : f32 to vector<8x128xf32>
    %671 = arith.mulf %520, %670 : vector<8x128xf32>
    %672 = arith.addf %669, %671 : vector<8x128xf32>
    %673 = vector.broadcast %155 : f32 to vector<8x128xf32>
    %674 = arith.mulf %547, %673 : vector<8x128xf32>
    %675 = arith.addf %672, %674 : vector<8x128xf32>
    %676 = vector.broadcast %163 : f32 to vector<8x128xf32>
    %677 = arith.mulf %574, %676 : vector<8x128xf32>
    %678 = arith.addf %675, %677 : vector<8x128xf32>
    %679 = vector.broadcast %171 : f32 to vector<8x128xf32>
    %680 = arith.addf %678, %679 : vector<8x128xf32>
    %cst_27 = arith.constant 0.000000e+00 : f32
    %681 = vector.broadcast %cst_27 : f32 to vector<8x128xf32>
    %682 = arith.maximumf %680, %681 : vector<8x128xf32>
    %683 = vector.broadcast %108 : f32 to vector<8x128xf32>
    %684 = arith.mulf %385, %683 : vector<8x128xf32>
    %685 = vector.broadcast %116 : f32 to vector<8x128xf32>
    %686 = arith.mulf %412, %685 : vector<8x128xf32>
    %687 = arith.addf %684, %686 : vector<8x128xf32>
    %688 = vector.broadcast %124 : f32 to vector<8x128xf32>
    %689 = arith.mulf %439, %688 : vector<8x128xf32>
    %690 = arith.addf %687, %689 : vector<8x128xf32>
    %691 = vector.broadcast %132 : f32 to vector<8x128xf32>
    %692 = arith.mulf %466, %691 : vector<8x128xf32>
    %693 = arith.addf %690, %692 : vector<8x128xf32>
    %694 = vector.broadcast %140 : f32 to vector<8x128xf32>
    %695 = arith.mulf %493, %694 : vector<8x128xf32>
    %696 = arith.addf %693, %695 : vector<8x128xf32>
    %697 = vector.broadcast %148 : f32 to vector<8x128xf32>
    %698 = arith.mulf %520, %697 : vector<8x128xf32>
    %699 = arith.addf %696, %698 : vector<8x128xf32>
    %700 = vector.broadcast %156 : f32 to vector<8x128xf32>
    %701 = arith.mulf %547, %700 : vector<8x128xf32>
    %702 = arith.addf %699, %701 : vector<8x128xf32>
    %703 = vector.broadcast %164 : f32 to vector<8x128xf32>
    %704 = arith.mulf %574, %703 : vector<8x128xf32>
    %705 = arith.addf %702, %704 : vector<8x128xf32>
    %706 = vector.broadcast %172 : f32 to vector<8x128xf32>
    %707 = arith.addf %705, %706 : vector<8x128xf32>
    %cst_28 = arith.constant 0.000000e+00 : f32
    %708 = vector.broadcast %cst_28 : f32 to vector<8x128xf32>
    %709 = arith.maximumf %707, %708 : vector<8x128xf32>
    %710 = vector.broadcast %109 : f32 to vector<8x128xf32>
    %711 = arith.mulf %385, %710 : vector<8x128xf32>
    %712 = vector.broadcast %117 : f32 to vector<8x128xf32>
    %713 = arith.mulf %412, %712 : vector<8x128xf32>
    %714 = arith.addf %711, %713 : vector<8x128xf32>
    %715 = vector.broadcast %125 : f32 to vector<8x128xf32>
    %716 = arith.mulf %439, %715 : vector<8x128xf32>
    %717 = arith.addf %714, %716 : vector<8x128xf32>
    %718 = vector.broadcast %133 : f32 to vector<8x128xf32>
    %719 = arith.mulf %466, %718 : vector<8x128xf32>
    %720 = arith.addf %717, %719 : vector<8x128xf32>
    %721 = vector.broadcast %141 : f32 to vector<8x128xf32>
    %722 = arith.mulf %493, %721 : vector<8x128xf32>
    %723 = arith.addf %720, %722 : vector<8x128xf32>
    %724 = vector.broadcast %149 : f32 to vector<8x128xf32>
    %725 = arith.mulf %520, %724 : vector<8x128xf32>
    %726 = arith.addf %723, %725 : vector<8x128xf32>
    %727 = vector.broadcast %157 : f32 to vector<8x128xf32>
    %728 = arith.mulf %547, %727 : vector<8x128xf32>
    %729 = arith.addf %726, %728 : vector<8x128xf32>
    %730 = vector.broadcast %165 : f32 to vector<8x128xf32>
    %731 = arith.mulf %574, %730 : vector<8x128xf32>
    %732 = arith.addf %729, %731 : vector<8x128xf32>
    %733 = vector.broadcast %173 : f32 to vector<8x128xf32>
    %734 = arith.addf %732, %733 : vector<8x128xf32>
    %cst_29 = arith.constant 0.000000e+00 : f32
    %735 = vector.broadcast %cst_29 : f32 to vector<8x128xf32>
    %736 = arith.maximumf %734, %735 : vector<8x128xf32>
    %737 = vector.broadcast %110 : f32 to vector<8x128xf32>
    %738 = arith.mulf %385, %737 : vector<8x128xf32>
    %739 = vector.broadcast %118 : f32 to vector<8x128xf32>
    %740 = arith.mulf %412, %739 : vector<8x128xf32>
    %741 = arith.addf %738, %740 : vector<8x128xf32>
    %742 = vector.broadcast %126 : f32 to vector<8x128xf32>
    %743 = arith.mulf %439, %742 : vector<8x128xf32>
    %744 = arith.addf %741, %743 : vector<8x128xf32>
    %745 = vector.broadcast %134 : f32 to vector<8x128xf32>
    %746 = arith.mulf %466, %745 : vector<8x128xf32>
    %747 = arith.addf %744, %746 : vector<8x128xf32>
    %748 = vector.broadcast %142 : f32 to vector<8x128xf32>
    %749 = arith.mulf %493, %748 : vector<8x128xf32>
    %750 = arith.addf %747, %749 : vector<8x128xf32>
    %751 = vector.broadcast %150 : f32 to vector<8x128xf32>
    %752 = arith.mulf %520, %751 : vector<8x128xf32>
    %753 = arith.addf %750, %752 : vector<8x128xf32>
    %754 = vector.broadcast %158 : f32 to vector<8x128xf32>
    %755 = arith.mulf %547, %754 : vector<8x128xf32>
    %756 = arith.addf %753, %755 : vector<8x128xf32>
    %757 = vector.broadcast %166 : f32 to vector<8x128xf32>
    %758 = arith.mulf %574, %757 : vector<8x128xf32>
    %759 = arith.addf %756, %758 : vector<8x128xf32>
    %760 = vector.broadcast %174 : f32 to vector<8x128xf32>
    %761 = arith.addf %759, %760 : vector<8x128xf32>
    %cst_30 = arith.constant 0.000000e+00 : f32
    %762 = vector.broadcast %cst_30 : f32 to vector<8x128xf32>
    %763 = arith.maximumf %761, %762 : vector<8x128xf32>
    %764 = vector.broadcast %111 : f32 to vector<8x128xf32>
    %765 = arith.mulf %385, %764 : vector<8x128xf32>
    %766 = vector.broadcast %119 : f32 to vector<8x128xf32>
    %767 = arith.mulf %412, %766 : vector<8x128xf32>
    %768 = arith.addf %765, %767 : vector<8x128xf32>
    %769 = vector.broadcast %127 : f32 to vector<8x128xf32>
    %770 = arith.mulf %439, %769 : vector<8x128xf32>
    %771 = arith.addf %768, %770 : vector<8x128xf32>
    %772 = vector.broadcast %135 : f32 to vector<8x128xf32>
    %773 = arith.mulf %466, %772 : vector<8x128xf32>
    %774 = arith.addf %771, %773 : vector<8x128xf32>
    %775 = vector.broadcast %143 : f32 to vector<8x128xf32>
    %776 = arith.mulf %493, %775 : vector<8x128xf32>
    %777 = arith.addf %774, %776 : vector<8x128xf32>
    %778 = vector.broadcast %151 : f32 to vector<8x128xf32>
    %779 = arith.mulf %520, %778 : vector<8x128xf32>
    %780 = arith.addf %777, %779 : vector<8x128xf32>
    %781 = vector.broadcast %159 : f32 to vector<8x128xf32>
    %782 = arith.mulf %547, %781 : vector<8x128xf32>
    %783 = arith.addf %780, %782 : vector<8x128xf32>
    %784 = vector.broadcast %167 : f32 to vector<8x128xf32>
    %785 = arith.mulf %574, %784 : vector<8x128xf32>
    %786 = arith.addf %783, %785 : vector<8x128xf32>
    %787 = vector.broadcast %175 : f32 to vector<8x128xf32>
    %788 = arith.addf %786, %787 : vector<8x128xf32>
    %cst_31 = arith.constant 0.000000e+00 : f32
    %789 = vector.broadcast %cst_31 : f32 to vector<8x128xf32>
    %790 = arith.maximumf %788, %789 : vector<8x128xf32>
    %791 = vector.broadcast %176 : f32 to vector<8x128xf32>
    %792 = arith.mulf %601, %791 : vector<8x128xf32>
    %793 = vector.broadcast %184 : f32 to vector<8x128xf32>
    %794 = arith.mulf %628, %793 : vector<8x128xf32>
    %795 = arith.addf %792, %794 : vector<8x128xf32>
    %796 = vector.broadcast %192 : f32 to vector<8x128xf32>
    %797 = arith.mulf %655, %796 : vector<8x128xf32>
    %798 = arith.addf %795, %797 : vector<8x128xf32>
    %799 = vector.broadcast %200 : f32 to vector<8x128xf32>
    %800 = arith.mulf %682, %799 : vector<8x128xf32>
    %801 = arith.addf %798, %800 : vector<8x128xf32>
    %802 = vector.broadcast %208 : f32 to vector<8x128xf32>
    %803 = arith.mulf %709, %802 : vector<8x128xf32>
    %804 = arith.addf %801, %803 : vector<8x128xf32>
    %805 = vector.broadcast %216 : f32 to vector<8x128xf32>
    %806 = arith.mulf %736, %805 : vector<8x128xf32>
    %807 = arith.addf %804, %806 : vector<8x128xf32>
    %808 = vector.broadcast %224 : f32 to vector<8x128xf32>
    %809 = arith.mulf %763, %808 : vector<8x128xf32>
    %810 = arith.addf %807, %809 : vector<8x128xf32>
    %811 = vector.broadcast %232 : f32 to vector<8x128xf32>
    %812 = arith.mulf %790, %811 : vector<8x128xf32>
    %813 = arith.addf %810, %812 : vector<8x128xf32>
    %814 = vector.broadcast %240 : f32 to vector<8x128xf32>
    %815 = arith.addf %813, %814 : vector<8x128xf32>
    %cst_32 = arith.constant 0.000000e+00 : f32
    %816 = vector.broadcast %cst_32 : f32 to vector<8x128xf32>
    %817 = arith.maximumf %815, %816 : vector<8x128xf32>
    %818 = vector.broadcast %177 : f32 to vector<8x128xf32>
    %819 = arith.mulf %601, %818 : vector<8x128xf32>
    %820 = vector.broadcast %185 : f32 to vector<8x128xf32>
    %821 = arith.mulf %628, %820 : vector<8x128xf32>
    %822 = arith.addf %819, %821 : vector<8x128xf32>
    %823 = vector.broadcast %193 : f32 to vector<8x128xf32>
    %824 = arith.mulf %655, %823 : vector<8x128xf32>
    %825 = arith.addf %822, %824 : vector<8x128xf32>
    %826 = vector.broadcast %201 : f32 to vector<8x128xf32>
    %827 = arith.mulf %682, %826 : vector<8x128xf32>
    %828 = arith.addf %825, %827 : vector<8x128xf32>
    %829 = vector.broadcast %209 : f32 to vector<8x128xf32>
    %830 = arith.mulf %709, %829 : vector<8x128xf32>
    %831 = arith.addf %828, %830 : vector<8x128xf32>
    %832 = vector.broadcast %217 : f32 to vector<8x128xf32>
    %833 = arith.mulf %736, %832 : vector<8x128xf32>
    %834 = arith.addf %831, %833 : vector<8x128xf32>
    %835 = vector.broadcast %225 : f32 to vector<8x128xf32>
    %836 = arith.mulf %763, %835 : vector<8x128xf32>
    %837 = arith.addf %834, %836 : vector<8x128xf32>
    %838 = vector.broadcast %233 : f32 to vector<8x128xf32>
    %839 = arith.mulf %790, %838 : vector<8x128xf32>
    %840 = arith.addf %837, %839 : vector<8x128xf32>
    %841 = vector.broadcast %241 : f32 to vector<8x128xf32>
    %842 = arith.addf %840, %841 : vector<8x128xf32>
    %cst_33 = arith.constant 0.000000e+00 : f32
    %843 = vector.broadcast %cst_33 : f32 to vector<8x128xf32>
    %844 = arith.maximumf %842, %843 : vector<8x128xf32>
    %845 = vector.broadcast %178 : f32 to vector<8x128xf32>
    %846 = arith.mulf %601, %845 : vector<8x128xf32>
    %847 = vector.broadcast %186 : f32 to vector<8x128xf32>
    %848 = arith.mulf %628, %847 : vector<8x128xf32>
    %849 = arith.addf %846, %848 : vector<8x128xf32>
    %850 = vector.broadcast %194 : f32 to vector<8x128xf32>
    %851 = arith.mulf %655, %850 : vector<8x128xf32>
    %852 = arith.addf %849, %851 : vector<8x128xf32>
    %853 = vector.broadcast %202 : f32 to vector<8x128xf32>
    %854 = arith.mulf %682, %853 : vector<8x128xf32>
    %855 = arith.addf %852, %854 : vector<8x128xf32>
    %856 = vector.broadcast %210 : f32 to vector<8x128xf32>
    %857 = arith.mulf %709, %856 : vector<8x128xf32>
    %858 = arith.addf %855, %857 : vector<8x128xf32>
    %859 = vector.broadcast %218 : f32 to vector<8x128xf32>
    %860 = arith.mulf %736, %859 : vector<8x128xf32>
    %861 = arith.addf %858, %860 : vector<8x128xf32>
    %862 = vector.broadcast %226 : f32 to vector<8x128xf32>
    %863 = arith.mulf %763, %862 : vector<8x128xf32>
    %864 = arith.addf %861, %863 : vector<8x128xf32>
    %865 = vector.broadcast %234 : f32 to vector<8x128xf32>
    %866 = arith.mulf %790, %865 : vector<8x128xf32>
    %867 = arith.addf %864, %866 : vector<8x128xf32>
    %868 = vector.broadcast %242 : f32 to vector<8x128xf32>
    %869 = arith.addf %867, %868 : vector<8x128xf32>
    %cst_34 = arith.constant 0.000000e+00 : f32
    %870 = vector.broadcast %cst_34 : f32 to vector<8x128xf32>
    %871 = arith.maximumf %869, %870 : vector<8x128xf32>
    %872 = vector.broadcast %179 : f32 to vector<8x128xf32>
    %873 = arith.mulf %601, %872 : vector<8x128xf32>
    %874 = vector.broadcast %187 : f32 to vector<8x128xf32>
    %875 = arith.mulf %628, %874 : vector<8x128xf32>
    %876 = arith.addf %873, %875 : vector<8x128xf32>
    %877 = vector.broadcast %195 : f32 to vector<8x128xf32>
    %878 = arith.mulf %655, %877 : vector<8x128xf32>
    %879 = arith.addf %876, %878 : vector<8x128xf32>
    %880 = vector.broadcast %203 : f32 to vector<8x128xf32>
    %881 = arith.mulf %682, %880 : vector<8x128xf32>
    %882 = arith.addf %879, %881 : vector<8x128xf32>
    %883 = vector.broadcast %211 : f32 to vector<8x128xf32>
    %884 = arith.mulf %709, %883 : vector<8x128xf32>
    %885 = arith.addf %882, %884 : vector<8x128xf32>
    %886 = vector.broadcast %219 : f32 to vector<8x128xf32>
    %887 = arith.mulf %736, %886 : vector<8x128xf32>
    %888 = arith.addf %885, %887 : vector<8x128xf32>
    %889 = vector.broadcast %227 : f32 to vector<8x128xf32>
    %890 = arith.mulf %763, %889 : vector<8x128xf32>
    %891 = arith.addf %888, %890 : vector<8x128xf32>
    %892 = vector.broadcast %235 : f32 to vector<8x128xf32>
    %893 = arith.mulf %790, %892 : vector<8x128xf32>
    %894 = arith.addf %891, %893 : vector<8x128xf32>
    %895 = vector.broadcast %243 : f32 to vector<8x128xf32>
    %896 = arith.addf %894, %895 : vector<8x128xf32>
    %cst_35 = arith.constant 0.000000e+00 : f32
    %897 = vector.broadcast %cst_35 : f32 to vector<8x128xf32>
    %898 = arith.maximumf %896, %897 : vector<8x128xf32>
    %899 = vector.broadcast %180 : f32 to vector<8x128xf32>
    %900 = arith.mulf %601, %899 : vector<8x128xf32>
    %901 = vector.broadcast %188 : f32 to vector<8x128xf32>
    %902 = arith.mulf %628, %901 : vector<8x128xf32>
    %903 = arith.addf %900, %902 : vector<8x128xf32>
    %904 = vector.broadcast %196 : f32 to vector<8x128xf32>
    %905 = arith.mulf %655, %904 : vector<8x128xf32>
    %906 = arith.addf %903, %905 : vector<8x128xf32>
    %907 = vector.broadcast %204 : f32 to vector<8x128xf32>
    %908 = arith.mulf %682, %907 : vector<8x128xf32>
    %909 = arith.addf %906, %908 : vector<8x128xf32>
    %910 = vector.broadcast %212 : f32 to vector<8x128xf32>
    %911 = arith.mulf %709, %910 : vector<8x128xf32>
    %912 = arith.addf %909, %911 : vector<8x128xf32>
    %913 = vector.broadcast %220 : f32 to vector<8x128xf32>
    %914 = arith.mulf %736, %913 : vector<8x128xf32>
    %915 = arith.addf %912, %914 : vector<8x128xf32>
    %916 = vector.broadcast %228 : f32 to vector<8x128xf32>
    %917 = arith.mulf %763, %916 : vector<8x128xf32>
    %918 = arith.addf %915, %917 : vector<8x128xf32>
    %919 = vector.broadcast %236 : f32 to vector<8x128xf32>
    %920 = arith.mulf %790, %919 : vector<8x128xf32>
    %921 = arith.addf %918, %920 : vector<8x128xf32>
    %922 = vector.broadcast %244 : f32 to vector<8x128xf32>
    %923 = arith.addf %921, %922 : vector<8x128xf32>
    %cst_36 = arith.constant 0.000000e+00 : f32
    %924 = vector.broadcast %cst_36 : f32 to vector<8x128xf32>
    %925 = arith.maximumf %923, %924 : vector<8x128xf32>
    %926 = vector.broadcast %181 : f32 to vector<8x128xf32>
    %927 = arith.mulf %601, %926 : vector<8x128xf32>
    %928 = vector.broadcast %189 : f32 to vector<8x128xf32>
    %929 = arith.mulf %628, %928 : vector<8x128xf32>
    %930 = arith.addf %927, %929 : vector<8x128xf32>
    %931 = vector.broadcast %197 : f32 to vector<8x128xf32>
    %932 = arith.mulf %655, %931 : vector<8x128xf32>
    %933 = arith.addf %930, %932 : vector<8x128xf32>
    %934 = vector.broadcast %205 : f32 to vector<8x128xf32>
    %935 = arith.mulf %682, %934 : vector<8x128xf32>
    %936 = arith.addf %933, %935 : vector<8x128xf32>
    %937 = vector.broadcast %213 : f32 to vector<8x128xf32>
    %938 = arith.mulf %709, %937 : vector<8x128xf32>
    %939 = arith.addf %936, %938 : vector<8x128xf32>
    %940 = vector.broadcast %221 : f32 to vector<8x128xf32>
    %941 = arith.mulf %736, %940 : vector<8x128xf32>
    %942 = arith.addf %939, %941 : vector<8x128xf32>
    %943 = vector.broadcast %229 : f32 to vector<8x128xf32>
    %944 = arith.mulf %763, %943 : vector<8x128xf32>
    %945 = arith.addf %942, %944 : vector<8x128xf32>
    %946 = vector.broadcast %237 : f32 to vector<8x128xf32>
    %947 = arith.mulf %790, %946 : vector<8x128xf32>
    %948 = arith.addf %945, %947 : vector<8x128xf32>
    %949 = vector.broadcast %245 : f32 to vector<8x128xf32>
    %950 = arith.addf %948, %949 : vector<8x128xf32>
    %cst_37 = arith.constant 0.000000e+00 : f32
    %951 = vector.broadcast %cst_37 : f32 to vector<8x128xf32>
    %952 = arith.maximumf %950, %951 : vector<8x128xf32>
    %953 = vector.broadcast %182 : f32 to vector<8x128xf32>
    %954 = arith.mulf %601, %953 : vector<8x128xf32>
    %955 = vector.broadcast %190 : f32 to vector<8x128xf32>
    %956 = arith.mulf %628, %955 : vector<8x128xf32>
    %957 = arith.addf %954, %956 : vector<8x128xf32>
    %958 = vector.broadcast %198 : f32 to vector<8x128xf32>
    %959 = arith.mulf %655, %958 : vector<8x128xf32>
    %960 = arith.addf %957, %959 : vector<8x128xf32>
    %961 = vector.broadcast %206 : f32 to vector<8x128xf32>
    %962 = arith.mulf %682, %961 : vector<8x128xf32>
    %963 = arith.addf %960, %962 : vector<8x128xf32>
    %964 = vector.broadcast %214 : f32 to vector<8x128xf32>
    %965 = arith.mulf %709, %964 : vector<8x128xf32>
    %966 = arith.addf %963, %965 : vector<8x128xf32>
    %967 = vector.broadcast %222 : f32 to vector<8x128xf32>
    %968 = arith.mulf %736, %967 : vector<8x128xf32>
    %969 = arith.addf %966, %968 : vector<8x128xf32>
    %970 = vector.broadcast %230 : f32 to vector<8x128xf32>
    %971 = arith.mulf %763, %970 : vector<8x128xf32>
    %972 = arith.addf %969, %971 : vector<8x128xf32>
    %973 = vector.broadcast %238 : f32 to vector<8x128xf32>
    %974 = arith.mulf %790, %973 : vector<8x128xf32>
    %975 = arith.addf %972, %974 : vector<8x128xf32>
    %976 = vector.broadcast %246 : f32 to vector<8x128xf32>
    %977 = arith.addf %975, %976 : vector<8x128xf32>
    %cst_38 = arith.constant 0.000000e+00 : f32
    %978 = vector.broadcast %cst_38 : f32 to vector<8x128xf32>
    %979 = arith.maximumf %977, %978 : vector<8x128xf32>
    %980 = vector.broadcast %183 : f32 to vector<8x128xf32>
    %981 = arith.mulf %601, %980 : vector<8x128xf32>
    %982 = vector.broadcast %191 : f32 to vector<8x128xf32>
    %983 = arith.mulf %628, %982 : vector<8x128xf32>
    %984 = arith.addf %981, %983 : vector<8x128xf32>
    %985 = vector.broadcast %199 : f32 to vector<8x128xf32>
    %986 = arith.mulf %655, %985 : vector<8x128xf32>
    %987 = arith.addf %984, %986 : vector<8x128xf32>
    %988 = vector.broadcast %207 : f32 to vector<8x128xf32>
    %989 = arith.mulf %682, %988 : vector<8x128xf32>
    %990 = arith.addf %987, %989 : vector<8x128xf32>
    %991 = vector.broadcast %215 : f32 to vector<8x128xf32>
    %992 = arith.mulf %709, %991 : vector<8x128xf32>
    %993 = arith.addf %990, %992 : vector<8x128xf32>
    %994 = vector.broadcast %223 : f32 to vector<8x128xf32>
    %995 = arith.mulf %736, %994 : vector<8x128xf32>
    %996 = arith.addf %993, %995 : vector<8x128xf32>
    %997 = vector.broadcast %231 : f32 to vector<8x128xf32>
    %998 = arith.mulf %763, %997 : vector<8x128xf32>
    %999 = arith.addf %996, %998 : vector<8x128xf32>
    %1000 = vector.broadcast %239 : f32 to vector<8x128xf32>
    %1001 = arith.mulf %790, %1000 : vector<8x128xf32>
    %1002 = arith.addf %999, %1001 : vector<8x128xf32>
    %1003 = vector.broadcast %247 : f32 to vector<8x128xf32>
    %1004 = arith.addf %1002, %1003 : vector<8x128xf32>
    %cst_39 = arith.constant 0.000000e+00 : f32
    %1005 = vector.broadcast %cst_39 : f32 to vector<8x128xf32>
    %1006 = arith.maximumf %1004, %1005 : vector<8x128xf32>
    %1007 = vector.broadcast %248 : f32 to vector<8x128xf32>
    %1008 = arith.mulf %817, %1007 : vector<8x128xf32>
    %1009 = vector.broadcast %249 : f32 to vector<8x128xf32>
    %1010 = arith.mulf %844, %1009 : vector<8x128xf32>
    %1011 = arith.addf %1008, %1010 : vector<8x128xf32>
    %1012 = vector.broadcast %250 : f32 to vector<8x128xf32>
    %1013 = arith.mulf %871, %1012 : vector<8x128xf32>
    %1014 = arith.addf %1011, %1013 : vector<8x128xf32>
    %1015 = vector.broadcast %251 : f32 to vector<8x128xf32>
    %1016 = arith.mulf %898, %1015 : vector<8x128xf32>
    %1017 = arith.addf %1014, %1016 : vector<8x128xf32>
    %1018 = vector.broadcast %252 : f32 to vector<8x128xf32>
    %1019 = arith.mulf %925, %1018 : vector<8x128xf32>
    %1020 = arith.addf %1017, %1019 : vector<8x128xf32>
    %1021 = vector.broadcast %253 : f32 to vector<8x128xf32>
    %1022 = arith.mulf %952, %1021 : vector<8x128xf32>
    %1023 = arith.addf %1020, %1022 : vector<8x128xf32>
    %1024 = vector.broadcast %254 : f32 to vector<8x128xf32>
    %1025 = arith.mulf %979, %1024 : vector<8x128xf32>
    %1026 = arith.addf %1023, %1025 : vector<8x128xf32>
    %1027 = vector.broadcast %255 : f32 to vector<8x128xf32>
    %1028 = arith.mulf %1006, %1027 : vector<8x128xf32>
    %1029 = arith.addf %1026, %1028 : vector<8x128xf32>
    %1030 = vector.broadcast %256 : f32 to vector<8x128xf32>
    %1031 = arith.addf %1029, %1030 : vector<8x128xf32>
    %c0_40 = arith.constant 0 : index
    %c0_41 = arith.constant 0 : index
    %1032 = vector.load %arg3[%c0_40, %c0_41] : memref<8x128xf32, #tpu.memory_space<vmem>>, vector<8x128xf32>
    tpu.vector_store %arg3[%c0_40, %c0_41], %1031 {strides = array<i32>} : memref<8x128xf32, #tpu.memory_space<vmem>>, vector<8x128xf32>,
    return
  }
  func.func @transform_0(%arg0: i32) -> i32 {
    %c0_i32 = arith.constant 0 : i32
    %c0_i32_0 = arith.constant 0 : i32
    return %c0_i32 : i32
  }
  func.func @transform_1(%arg0: i32) -> (i32, i32, i32) {
    %c0_i32 = arith.constant 0 : i32
    %c0_i32_0 = arith.constant 0 : i32
    %c0_i32_1 = arith.constant 0 : i32
    return %c0_i32, %arg0, %c0_i32_0 : i32, i32, i32
  }
  func.func @transform_2(%arg0: i32) -> (i32, i32) {
    %c0_i32 = arith.constant 0 : i32
    %c0_i32_0 = arith.constant 0 : i32
    return %arg0, %c0_i32 : i32, i32
  }
}

</mosaic_0001>

<llo_original>
// kernel: relu_diffusion_forward.1
$region0: #{relu_diffusion_forward.1}
  #allocation0 [shape = 'u32[]', space=smem, size = 0x4, offset = 0x4, fixed_abs, tag = 'smem constant byte address 0x4 - core index']
  #allocation1 [shape = 'u32[144,128]{1,0:T(1,128)}', space=vmem, size = 0x12000, scoped, tag = 'internal scratch']
  %s0 = inlined_call_operand.vmem [shape: f32[257], index: 0, kind: input, shape index: {}]
  %s1 = inlined_call_operand.vmem [shape: f32[3,64,128], index: 1, kind: input, shape index: {}]
  %s2 = inlined_call_operand.vmem [shape: f32[64,128], index: 2, kind: output, shape index: {}]
  %s3 = sld [smem:[#allocation0]]
  $region83: #{relu_diffusion_forward.1} parent=0
    _
  %s5 = ssub.s32 1, %s3
  %s6 = scalar_select 0, %s5, %s3
  $region1: #{relu_diffusion_forward.1} parent=0
    #allocation2 [shape = 'u8[1536]{0}', space=smem, size = 0x600, scoped, tag = 'input window, operand 0, single buffered']
    #allocation3 [shape = 's32[2]{0}', space=sflag, size = 0x8, scoped, tag = 'scoped memory for relu_diffusion_forward.1']
    #allocation4 [shape = 'u8[24576]{0}', space=vmem, size = 0x6000, scoped, tag = 'input window, operand 1']
    %7 = vsyncpa [#allocation3], 0
    loop: start=0, step=1, limit=10
    $region2: #{relu_diffusion_forward.1} parent=1 // loop_pre_header
      _
    $region3: #{relu_diffusion_forward.1} parent=1 // loop_header
      %s9 = sphi 0, %s13
      %p10 = scmp.ge.s32.totalorder %s9, 10
      %s17 = sphi 0, %s17
      %s19 = sphi 0, %s17
      %s20 = sphi 0, %s19
      %s34 = sphi 0, %s20
      %s40 = sphi 0, %s42
      %s43 = sphi 0, %s40
      %s44 = sphi 0, %s43
      %s60 = sphi 0, %s44
      %s66 = sphi 0, %s68
      %s69 = sphi 0, %s66
      %s70 = sphi 0, %s69
      %s86 = sphi 0, %s70
    $region4: #{relu_diffusion_forward.1} parent=1 // loop_header_branch
      %12 = sbr.rel (%p10) target = $region8
    $region5: #{relu_diffusion_forward.1} parent=1 // loop_body
      %s14 = ssub.s32 %s9, 1
      %s15 = ssub.s32 %s9, 2
      %s16 = sadd.s32 %s9, 1
      %s18 = sadd.s32 %s17, 1
      %p21 = scmp.eq.s32.totalorder %s9, 7
      %p22 = scmp.ne.s32.totalorder %s17, %s19
      %p23 = scmp.eq.s32.totalorder %s9, 0
      %p24 = por %p22, %p23
      %p25 = scmp.ne.s32.totalorder %s17, %s19
      %p26 = scmp.eq.s32.totalorder %s14, 7
      %p27 = por %p25, %p26
      %p28 = scmp.ne.s32.totalorder %s19, %s20
      %p29 = scmp.eq.s32.totalorder %s14, 0
      %p30 = por %p28, %p29
      %p31 = scmp.ne.s32.totalorder %s19, %s20
      %p32 = scmp.eq.s32.totalorder %s15, 7
      %p33 = por %p31, %p32
      %p35 = scmp.ne.s32.totalorder %s20, %s34
      %p36 = scmp.eq.s32.totalorder %s15, 0
      %p37 = por %p35, %p36
      %s38 = ssub.s32 %s9, %s16
      %p39 = scmp.eq.s32.totalorder %s38, 0
      %s41 = sadd.s32 %s40, 1
      %s42 = scalar_select %p39, %s40, %s41
      %p45 = pneg %p39
      %p46 = scmp.eq.s32.totalorder %s9, 7
      %p47 = por %p45, %p46
      %p48 = scmp.ne.s32.totalorder %s40, %s43
      %p49 = scmp.eq.s32.totalorder %s9, 0
      %p50 = por %p48, %p49
      %p51 = scmp.ne.s32.totalorder %s40, %s43
      %p52 = scmp.eq.s32.totalorder %s14, 7
      %p53 = por %p51, %p52
      %p54 = scmp.ne.s32.totalorder %s43, %s44
      %p55 = scmp.eq.s32.totalorder %s14, 0
      %p56 = por %p54, %p55
      %p57 = scmp.ne.s32.totalorder %s43, %s44
      %p58 = scmp.eq.s32.totalorder %s15, 7
      %p59 = por %p57, %p58
      %p61 = scmp.ne.s32.totalorder %s44, %s60
      %p62 = scmp.eq.s32.totalorder %s15, 0
      %p63 = por %p61, %p62
      %s64 = ssub.s32 %s9, %s16
      %p65 = scmp.eq.s32.totalorder %s64, 0
      %s67 = sadd.s32 %s66, 1
      %s68 = scalar_select %p65, %s66, %s67
      %p71 = pneg %p65
      %p72 = scmp.eq.s32.totalorder %s9, 7
      %p73 = por %p71, %p72
      %p74 = scmp.ne.s32.totalorder %s66, %s69
      %p75 = scmp.eq.s32.totalorder %s9, 0
      %p76 = por %p74, %p75
      %p77 = scmp.ne.s32.totalorder %s66, %s69
      %p78 = scmp.eq.s32.totalorder %s14, 7
      %p79 = por %p77, %p78
      %p80 = scmp.ne.s32.totalorder %s69, %s70
      %p81 = scmp.eq.s32.totalorder %s14, 0
      %p82 = por %p80, %p81
      %p83 = scmp.ne.s32.totalorder %s69, %s70
      %p84 = scmp.eq.s32.totalorder %s15, 7
      %p85 = por %p83, %p84
      %p87 = scmp.ne.s32.totalorder %s70, %s86
      %p88 = scmp.eq.s32.totalorder %s15, 0
      %p89 = por %p87, %p88
      %p90 = scmp.le.s32.totalorder 1, %s9
      %p91 = scmp.lt.s32.totalorder %s9, 9
      %p92 = pnand %p90, %p91
      %p93 = pneg %p92
      // Predicated region
      $region9: #{relu_diffusion_forward.1} parent=5 // pred_check
        _
      $region10: #{relu_diffusion_forward.1} parent=5 // pred_check_branch
        %95 = sbr.rel (%p92) target = $region12
      $region11: #{relu_diffusion_forward.1} parent=5 // pred_region
        %s96 = ssub.s32 %s9, 1
        // Predicated region
        $region13: #{relu_diffusion_forward.1} parent=11 // pred_check
          %p97 = pneg %p30
        $region14: #{relu_diffusion_forward.1} parent=11 // pred_check_branch
          %99 = sbr.rel (%p97) target = $region16
        $region15: #{relu_diffusion_forward.1} parent=11 // pred_region
          %s101 = ssub.s32 48, 48
          %102 = vsyncadd [#allocation3], %s101
          %s104 = sshll.u32 %s0, 4
          %s105 = int_to_ptr.vmem [resolvable:$true] %s104
          %107 = dma.vmem_to_smem %s105, 48, [#allocation2], [#allocation3]
        $region16: #{relu_diffusion_forward.1} parent=11 // pred_fallthru
          _
      $region12: #{relu_diffusion_forward.1} parent=5 // pred_fallthru
        _
      %p108 = scmp.lt.s32.totalorder %s9, 8
      // Predicated region
      $region17: #{relu_diffusion_forward.1} parent=5 // pred_check
        %p109 = pneg %p108
      $region18: #{relu_diffusion_forward.1} parent=5 // pred_check_branch
        %111 = sbr.rel (%p109) target = $region20
      $region19: #{relu_diffusion_forward.1} parent=5 // pred_region
        // Predicated region
        $region21: #{relu_diffusion_forward.1} parent=19 // pred_check
          %p112 = pneg %p50
        $region22: #{relu_diffusion_forward.1} parent=19 // pred_check_branch
          %114 = sbr.rel (%p112) target = $region24
        $region23: #{relu_diffusion_forward.1} parent=19 // pred_region
          %s115 = sand.u32 %s40, 1
          %s116 = sand.u32 %s40, 1
          %s117 = smul.addr %s116, 24
          %s118 = scalar_lea.vmem [#allocation4], %s117
          %s119 = smul.addr %s9, 8
          %s120 = scalar_lea.vmem %s1, %s119
          // Predicated region
          $region25: #{relu_diffusion_forward.1} parent=23 // pred_check
            _
          $region26: #{relu_diffusion_forward.1} parent=23 // pred_check_branch
            %122 = sbr.rel (0) target = $region28
          $region27: #{relu_diffusion_forward.1} parent=23 // pred_region
            // Predicated region
            $region29: #{relu_diffusion_forward.1} parent=27 // pred_check
              _
            $region30: #{relu_diffusion_forward.1} parent=27 // pred_check_branch
              %124 = sbr.rel (0) target = $region32
            $region31: #{relu_diffusion_forward.1} parent=27 // pred_region
              // Predicated region
              $region44: #{relu_diffusion_forward.1} parent=31 // pred_check
                _
              $region45: #{relu_diffusion_forward.1} parent=31 // pred_check_branch
                %144 = sbr.rel (0) target = $region47
              $region46: #{relu_diffusion_forward.1} parent=31 // pred_region
                loop: start=0, step=1, limit=1
                $region48: #{relu_diffusion_forward.1} parent=46 // loop_pre_header
                  _
                $region49: #{relu_diffusion_forward.1} parent=46 // loop_header
                  %s146 = sphi 0, %s150
                  %p147 = scmp.ge.s32.totalorder %s146, 1
                  %s151 = sphi %s120, %s120
                  %s152 = sphi %s118, %s118
                $region50: #{relu_diffusion_forward.1} parent=46 // loop_header_branch
                  %149 = sbr.rel (%p147) target = $region54
                $region51: #{relu_diffusion_forward.1} parent=46 // loop_body
                  %v153 = vld [vmem:[%s151] sm:$0xff]
                  %154 = vst [vmem:[%s152] sm:$0xff] %v153
                  %v155 = vld [vmem:[%s151 + $0x40] sm:$0xff]
                  %156 = vst [vmem:[%s152 + $0x8] sm:$0xff] %v155
                  %v157 = vld [vmem:[%s151 + $0x80] sm:$0xff]
                  %158 = vst [vmem:[%s152 + $0x10] sm:$0xff] %v157
                $region52: #{relu_diffusion_forward.1} parent=46 // loop_footer
                  %s150 = sadd.s32 1, %s146
                $region53: #{relu_diffusion_forward.1} parent=46 // loop_footer_branch
                  %145 = sbr.rel target = $region49
                $region54: #{relu_diffusion_forward.1} parent=46 // loop_exit
                  _
              $region47: #{relu_diffusion_forward.1} parent=31 // pred_fallthru
                _
              // Predicated region
              $region55: #{relu_diffusion_forward.1} parent=31 // pred_check
                _
              $region56: #{relu_diffusion_forward.1} parent=31 // pred_check_branch
                %160 = sbr.rel target = $region58
              $region57: #{relu_diffusion_forward.1} parent=31 // pred_region
                _
              $region58: #{relu_diffusion_forward.1} parent=31 // pred_fallthru
                _
            $region32: #{relu_diffusion_forward.1} parent=27 // pred_fallthru
              _
            // Predicated region
            $region33: #{relu_diffusion_forward.1} parent=27 // pred_check
              _
            $region34: #{relu_diffusion_forward.1} parent=27 // pred_check_branch
              %126 = sbr.rel target = $region36
            $region35: #{relu_diffusion_forward.1} parent=27 // pred_region
              %s128 = ssub.s32 256, 1
              loop: start=0, step=1, limit=1
              $region37: #{relu_diffusion_forward.1} parent=35 // loop_pre_header
                _
              $region38: #{relu_diffusion_forward.1} parent=35 // loop_header
                %s130 = sphi 0, %s134
                %p131 = scmp.ge.s32.totalorder %s130, 1
                %s135 = sphi %s120, %s120
                %s136 = sphi %s118, %s118
              $region39: #{relu_diffusion_forward.1} parent=35 // loop_header_branch
                %133 = sbr.rel (%p131) target = $region43
              $region40: #{relu_diffusion_forward.1} parent=35 // loop_body
                %v137 = vld [vmem:[%s135] sm:%s128]
                %138 = vst [vmem:[%s136] sm:%s128] %v137
                %v139 = vld [vmem:[%s135 + $0x40] sm:%s128]
                %140 = vst [vmem:[%s136 + $0x8] sm:%s128] %v139
                %v141 = vld [vmem:[%s135 + $0x80] sm:%s128]
                %142 = vst [vmem:[%s136 + $0x10] sm:%s128] %v141
              $region41: #{relu_diffusion_forward.1} parent=35 // loop_footer
                %s134 = sadd.s32 1, %s130
              $region42: #{relu_diffusion_forward.1} parent=35 // loop_footer_branch
                %129 = sbr.rel target = $region38
              $region43: #{relu_diffusion_forward.1} parent=35 // loop_exit
                _
            $region36: #{relu_diffusion_forward.1} parent=27 // pred_fallthru
              _
          $region28: #{relu_diffusion_forward.1} parent=23 // pred_fallthru
            _
          %161 = vnop
        $region24: #{relu_diffusion_forward.1} parent=19 // pred_fallthru
          _
      $region20: #{relu_diffusion_forward.1} parent=5 // pred_fallthru
        _
      %p162 = scmp.le.s32.totalorder 1, %s9
      %p163 = scmp.lt.s32.totalorder %s9, 9
      %p164 = pnand %p162, %p163
      %p165 = pneg %p164
      // Predicated region
      $region59: #{relu_diffusion_forward.1} parent=5 // pred_check
        _
      $region60: #{relu_diffusion_forward.1} parent=5 // pred_check_branch
        %167 = sbr.rel (%p164) target = $region62
      $region61: #{relu_diffusion_forward.1} parent=5 // pred_region
        %s168 = ssub.s32 %s9, 1
        // Predicated region
        $region63: #{relu_diffusion_forward.1} parent=61 // pred_check
          %p169 = pneg %p30
        $region64: #{relu_diffusion_forward.1} parent=61 // pred_check_branch
          %171 = sbr.rel (%p169) target = $region66
        $region65: #{relu_diffusion_forward.1} parent=61 // pred_region
          %172 = dma.done [#allocation3], 48
        $region66: #{relu_diffusion_forward.1} parent=61 // pred_fallthru
          _
        %s173 = sand.u32 %s43, 1
        %s174 = sand.u32 %s43, 1
        %s175 = smul.addr %s174, 24
        %s176 = scalar_lea.vmem [#allocation4], %s175
        // Predicated region
        $region67: #{relu_diffusion_forward.1} parent=61 // pred_check
          %p177 = pneg %p56
        $region68: #{relu_diffusion_forward.1} parent=61 // pred_check_branch
          %179 = sbr.rel (%p177) target = $region70
        $region69: #{relu_diffusion_forward.1} parent=61 // pred_region
          _
        $region70: #{relu_diffusion_forward.1} parent=61 // pred_fallthru
          _
        %180 = sfence
        %p181 = pneg %p30
        %p182 = pneg %p27
        %s183 = sand.u32 %s43, 1
        %s184 = sand.u32 %s43, 1
        %s185 = smul.addr %s184, 24
        %s186 = scalar_lea.vmem [#allocation4], %s185
        %p187 = pneg %p56
        %p188 = pneg %p53
        %p189 = pneg %p82
        %p190 = pneg %p79
        %p191 = scmp.lt.s32.totalorder %s14, 7
        %s192 = scalar_select %p191, %s14, 7
        %s193 = smul.addr %s192, 8
        %s194 = scalar_lea.vmem %s2, %s193
        %p195 = scmp.lt.s32.totalorder %s14, 7
        %s196 = scalar_select %p195, %s14, 7
        %s197 = smul.addr %s196, 8
        %s198 = scalar_lea.vmem %s2, %s197
        %s199 = sld [smem:[#allocation2]]
        %s200 = sld [smem:[#allocation2 + $0x1]]
        %s201 = sld [smem:[#allocation2 + $0x2]]
        %s202 = sld [smem:[#allocation2 + $0x3]]
        %s203 = sld [smem:[#allocation2 + $0x4]]
        %s204 = sld [smem:[#allocation2 + $0x5]]
        %s205 = sld [smem:[#allocation2 + $0x6]]
        %s206 = sld [smem:[#allocation2 + $0x7]]
        %s207 = sld [smem:[#allocation2 + $0x8]]
        %s208 = sld [smem:[#allocation2 + $0x9]]
        %s209 = sld [smem:[#allocation2 + $0xa]]
        %s210 = sld [smem:[#allocation2 + $0xb]]
        %s211 = sld [smem:[#allocation2 + $0xc]]
        %s212 = sld [smem:[#allocation2 + $0xd]]
        %s213 = sld [smem:[#allocation2 + $0xe]]
        %s214 = sld [smem:[#allocation2 + $0xf]]
        %s215 = sld [smem:[#allocation2 + $0x10]]
        %s216 = sld [smem:[#allocation2 + $0x11]]
        %s217 = sld [smem:[#allocation2 + $0x12]]
        %s218 = sld [smem:[#allocation2 + $0x13]]
        %s219 = sld [smem:[#allocation2 + $0x14]]
        %s220 = sld [smem:[#allocation2 + $0x15]]
        %s221 = sld [smem:[#allocation2 + $0x16]]
        %s222 = sld [smem:[#allocation2 + $0x17]]
        %s223 = sld [smem:[#allocation2 + $0x18]]
        %s224 = sld [smem:[#allocation2 + $0x19]]
        %s225 = sld [smem:[#allocation2 + $0x1a]]
        %s226 = sld [smem:[#allocation2 + $0x1b]]
        %s227 = sld [smem:[#allocation2 + $0x1c]]
        %s228 = sld [smem:[#allocation2 + $0x1d]]
        %s229 = sld [smem:[#allocation2 + $0x1e]]
        %s230 = sld [smem:[#allocation2 + $0x1f]]
        %s231 = sld [smem:[#allocation2 + $0x20]]
        %s232 = sld [smem:[#allocation2 + $0x21]]
        %s233 = sld [smem:[#allocation2 + $0x22]]
        %s234 = sld [smem:[#allocation2 + $0x23]]
        %s235 = sld [smem:[#allocation2 + $0x24]]
        %s236 = sld [smem:[#allocation2 + $0x25]]
        %s237 = sld [smem:[#allocation2 + $0x26]]
        %s238 = sld [smem:[#allocation2 + $0x27]]
        %s239 = sld [smem:[#allocation2 + $0x28]]
        %s240 = sld [smem:[#allocation2 + $0x29]]
        %s241 = sld [smem:[#allocation2 + $0x2a]]
        %s242 = sld [smem:[#allocation2 + $0x2b]]
        %s243 = sld [smem:[#allocation2 + $0x2c]]
        %s244 = sld [smem:[#allocation2 + $0x2d]]
        %s245 = sld [smem:[#allocation2 + $0x2e]]
        %s246 = sld [smem:[#allocation2 + $0x2f]]
        %s247 = sld [smem:[#allocation2 + $0x30]]
        %s248 = sld [smem:[#allocation2 + $0x31]]
        %s249 = sld [smem:[#allocation2 + $0x32]]
        %s250 = sld [smem:[#allocation2 + $0x33]]
        %s251 = sld [smem:[#allocation2 + $0x34]]
        %s252 = sld [smem:[#allocation2 + $0x35]]
        %s253 = sld [smem:[#allocation2 + $0x36]]
        %s254 = sld [smem:[#allocation2 + $0x37]]
        %s255 = sld [smem:[#allocation2 + $0x38]]
        %s256 = sld [smem:[#allocation2 + $0x39]]
        %s257 = sld [smem:[#allocation2 + $0x3a]]
        %s258 = sld [smem:[#allocation2 + $0x3b]]
        %s259 = sld [smem:[#allocation2 + $0x3c]]
        %s260 = sld [smem:[#allocation2 + $0x3d]]
        %s261 = sld [smem:[#allocation2 + $0x3e]]
        %s262 = sld [smem:[#allocation2 + $0x3f]]
        %s263 = sld [smem:[#allocation2 + $0x40]]
        %s264 = sld [smem:[#allocation2 + $0x41]]
        %s265 = sld [smem:[#allocation2 + $0x42]]
        %s266 = sld [smem:[#allocation2 + $0x43]]
        %s267 = sld [smem:[#allocation2 + $0x44]]
        %s268 = sld [smem:[#allocation2 + $0x45]]
        %s269 = sld [smem:[#allocation2 + $0x46]]
        %s270 = sld [smem:[#allocation2 + $0x47]]
        %s271 = sld [smem:[#allocation2 + $0x48]]
        %s272 = sld [smem:[#allocation2 + $0x49]]
        %s273 = sld [smem:[#allocation2 + $0x4a]]
        %s274 = sld [smem:[#allocation2 + $0x4b]]
        %s275 = sld [smem:[#allocation2 + $0x4c]]
        %s276 = sld [smem:[#allocation2 + $0x4d]]
        %s277 = sld [smem:[#allocation2 + $0x4e]]
        %s278 = sld [smem:[#allocation2 + $0x4f]]
        %s279 = sld [smem:[#allocation2 + $0x50]]
        %s280 = sld [smem:[#allocation2 + $0x51]]
        %s281 = sld [smem:[#allocation2 + $0x52]]
        %s282 = sld [smem:[#allocation2 + $0x53]]
        %s283 = sld [smem:[#allocation2 + $0x54]]
        %s284 = sld [smem:[#allocation2 + $0x55]]
        %s285 = sld [smem:[#allocation2 + $0x56]]
        %s286 = sld [smem:[#allocation2 + $0x57]]
        %s287 = sld [smem:[#allocation2 + $0x58]]
        %s288 = sld [smem:[#allocation2 + $0x59]]
        %s289 = sld [smem:[#allocation2 + $0x5a]]
        %s290 = sld [smem:[#allocation2 + $0x5b]]
        %s291 = sld [smem:[#allocation2 + $0x5c]]
        %s292 = sld [smem:[#allocation2 + $0x5d]]
        %s293 = sld [smem:[#allocation2 + $0x5e]]
        %s294 = sld [smem:[#allocation2 + $0x5f]]
        %s295 = sld [smem:[#allocation2 + $0x60]]
        %s296 = sld [smem:[#allocation2 + $0x61]]
        %s297 = sld [smem:[#allocation2 + $0x62]]
        %s298 = sld [smem:[#allocation2 + $0x63]]
        %s299 = sld [smem:[#allocation2 + $0x64]]
        %s300 = sld [smem:[#allocation2 + $0x65]]
        %s301 = sld [smem:[#allocation2 + $0x66]]
        %s302 = sld [smem:[#allocation2 + $0x67]]
        %s303 = sld [smem:[#allocation2 + $0x68]]
        %s304 = sld [smem:[#allocation2 + $0x69]]
        %s305 = sld [smem:[#allocation2 + $0x6a]]
        %s306 = sld [smem:[#allocation2 + $0x6b]]
        %s307 = sld [smem:[#allocation2 + $0x6c]]
        %s308 = sld [smem:[#allocation2 + $0x6d]]
        %s309 = sld [smem:[#allocation2 + $0x6e]]
        %s310 = sld [smem:[#allocation2 + $0x6f]]
        %s311 = sld [smem:[#allocation2 + $0x70]]
        %s312 = sld [smem:[#allocation2 + $0x71]]
        %s313 = sld [smem:[#allocation2 + $0x72]]
        %s314 = sld [smem:[#allocation2 + $0x73]]
        %s315 = sld [smem:[#allocation2 + $0x74]]
        %s316 = sld [smem:[#allocation2 + $0x75]]
        %s317 = sld [smem:[#allocation2 + $0x76]]
        %s318 = sld [smem:[#allocation2 + $0x77]]
        %s319 = sld [smem:[#allocation2 + $0x78]]
        %s320 = sld [smem:[#allocation2 + $0x79]]
        %s321 = sld [smem:[#allocation2 + $0x7a]]
        %s322 = sld [smem:[#allocation2 + $0x7b]]
        %s323 = sld [smem:[#allocation2 + $0x7c]]
        %s324 = sld [smem:[#allocation2 + $0x7d]]
        %s325 = sld [smem:[#allocation2 + $0x7e]]
        %s326 = sld [smem:[#allocation2 + $0x7f]]
        %s327 = sld [smem:[#allocation2 + $0x80]]
        %s328 = sld [smem:[#allocation2 + $0x81]]
        %s329 = sld [smem:[#allocation2 + $0x82]]
        %s330 = sld [smem:[#allocation2 + $0x83]]
        %s331 = sld [smem:[#allocation2 + $0x84]]
        %s332 = sld [smem:[#allocation2 + $0x85]]
        %s333 = sld [smem:[#allocation2 + $0x86]]
        %s334 = sld [smem:[#allocation2 + $0x87]]
        %s335 = sld [smem:[#allocation2 + $0x88]]
        %s336 = sld [smem:[#allocation2 + $0x89]]
        %s337 = sld [smem:[#allocation2 + $0x8a]]
        %s338 = sld [smem:[#allocation2 + $0x8b]]
        %s339 = sld [smem:[#allocation2 + $0x8c]]
        %s340 = sld [smem:[#allocation2 + $0x8d]]
        %s341 = sld [smem:[#allocation2 + $0x8e]]
        %s342 = sld [smem:[#allocation2 + $0x8f]]
        %s343 = sld [smem:[#allocation2 + $0x90]]
        %s344 = sld [smem:[#allocation2 + $0x91]]
        %s345 = sld [smem:[#allocation2 + $0x92]]
        %s346 = sld [smem:[#allocation2 + $0x93]]
        %s347 = sld [smem:[#allocation2 + $0x94]]
        %s348 = sld [smem:[#allocation2 + $0x95]]
        %s349 = sld [smem:[#allocation2 + $0x96]]
        %s350 = sld [smem:[#allocation2 + $0x97]]
        %s351 = sld [smem:[#allocation2 + $0x98]]
        %s352 = sld [smem:[#allocation2 + $0x99]]
        %s353 = sld [smem:[#allocation2 + $0x9a]]
        %s354 = sld [smem:[#allocation2 + $0x9b]]
        %s355 = sld [smem:[#allocation2 + $0x9c]]
        %s356 = sld [smem:[#allocation2 + $0x9d]]
        %s357 = sld [smem:[#allocation2 + $0x9e]]
        %s358 = sld [smem:[#allocation2 + $0x9f]]
        %s359 = sld [smem:[#allocation2 + $0xa0]]
        %s360 = sld [smem:[#allocation2 + $0xa1]]
        %s361 = sld [smem:[#allocation2 + $0xa2]]
        %s362 = sld [smem:[#allocation2 + $0xa3]]
        %s363 = sld [smem:[#allocation2 + $0xa4]]
        %s364 = sld [smem:[#allocation2 + $0xa5]]
        %s365 = sld [smem:[#allocation2 + $0xa6]]
        %s366 = sld [smem:[#allocation2 + $0xa7]]
        %s367 = sld [smem:[#allocation2 + $0xa8]]
        %s368 = sld [smem:[#allocation2 + $0xa9]]
        %s369 = sld [smem:[#allocation2 + $0xaa]]
        %s370 = sld [smem:[#allocation2 + $0xab]]
        %s371 = sld [smem:[#allocation2 + $0xac]]
        %s372 = sld [smem:[#allocation2 + $0xad]]
        %s373 = sld [smem:[#allocation2 + $0xae]]
        %s374 = sld [smem:[#allocation2 + $0xaf]]
        %s375 = sld [smem:[#allocation2 + $0xb0]]
        %s376 = sld [smem:[#allocation2 + $0xb1]]
        %s377 = sld [smem:[#allocation2 + $0xb2]]
        %s378 = sld [smem:[#allocation2 + $0xb3]]
        %s379 = sld [smem:[#allocation2 + $0xb4]]
        %s380 = sld [smem:[#allocation2 + $0xb5]]
        %s381 = sld [smem:[#allocation2 + $0xb6]]
        %s382 = sld [smem:[#allocation2 + $0xb7]]
        %s383 = sld [smem:[#allocation2 + $0xb8]]
        %s384 = sld [smem:[#allocation2 + $0xb9]]
        %s385 = sld [smem:[#allocation2 + $0xba]]
        %s386 = sld [smem:[#allocation2 + $0xbb]]
        %s387 = sld [smem:[#allocation2 + $0xbc]]
        %s388 = sld [smem:[#allocation2 + $0xbd]]
        %s389 = sld [smem:[#allocation2 + $0xbe]]
        %s390 = sld [smem:[#allocation2 + $0xbf]]
        %s391 = sld [smem:[#allocation2 + $0xc0]]
        %s392 = sld [smem:[#allocation2 + $0xc1]]
        %s393 = sld [smem:[#allocation2 + $0xc2]]
        %s394 = sld [smem:[#allocation2 + $0xc3]]
        %s395 = sld [smem:[#allocation2 + $0xc4]]
        %s396 = sld [smem:[#allocation2 + $0xc5]]
        %s397 = sld [smem:[#allocation2 + $0xc6]]
        %s398 = sld [smem:[#allocation2 + $0xc7]]
        %s399 = sld [smem:[#allocation2 + $0xc8]]
        %s400 = sld [smem:[#allocation2 + $0xc9]]
        %s401 = sld [smem:[#allocation2 + $0xca]]
        %s402 = sld [smem:[#allocation2 + $0xcb]]
        %s403 = sld [smem:[#allocation2 + $0xcc]]
        %s404 = sld [smem:[#allocation2 + $0xcd]]
        %s405 = sld [smem:[#allocation2 + $0xce]]
        %s406 = sld [smem:[#allocation2 + $0xcf]]
        %s407 = sld [smem:[#allocation2 + $0xd0]]
        %s408 = sld [smem:[#allocation2 + $0xd1]]
        %s409 = sld [smem:[#allocation2 + $0xd2]]
        %s410 = sld [smem:[#allocation2 + $0xd3]]
        %s411 = sld [smem:[#allocation2 + $0xd4]]
        %s412 = sld [smem:[#allocation2 + $0xd5]]
        %s413 = sld [smem:[#allocation2 + $0xd6]]
        %s414 = sld [smem:[#allocation2 + $0xd7]]
        %s415 = sld [smem:[#allocation2 + $0xd8]]
        %s416 = sld [smem:[#allocation2 + $0xd9]]
        %s417 = sld [smem:[#allocation2 + $0xda]]
        %s418 = sld [smem:[#allocation2 + $0xdb]]
        %s419 = sld [smem:[#allocation2 + $0xdc]]
        %s420 = sld [smem:[#allocation2 + $0xdd]]
        %s421 = sld [smem:[#allocation2 + $0xde]]
        %s422 = sld [smem:[#allocation2 + $0xdf]]
        %s423 = sld [smem:[#allocation2 + $0xe0]]
        %s424 = sld [smem:[#allocation2 + $0xe1]]
        %s425 = sld [smem:[#allocation2 + $0xe2]]
        %s426 = sld [smem:[#allocation2 + $0xe3]]
        %s427 = sld [smem:[#allocation2 + $0xe4]]
        %s428 = sld [smem:[#allocation2 + $0xe5]]
        %s429 = sld [smem:[#allocation2 + $0xe6]]
        %s430 = sld [smem:[#allocation2 + $0xe7]]
        %s431 = sld [smem:[#allocation2 + $0xe8]]
        %s432 = sld [smem:[#allocation2 + $0xe9]]
        %s433 = sld [smem:[#allocation2 + $0xea]]
        %s434 = sld [smem:[#allocation2 + $0xeb]]
        %s435 = sld [smem:[#allocation2 + $0xec]]
        %s436 = sld [smem:[#allocation2 + $0xed]]
        %s437 = sld [smem:[#allocation2 + $0xee]]
        %s438 = sld [smem:[#allocation2 + $0xef]]
        %s439 = sld [smem:[#allocation2 + $0xf0]]
        %s440 = sld [smem:[#allocation2 + $0xf1]]
        %s441 = sld [smem:[#allocation2 + $0xf2]]
        %s442 = sld [smem:[#allocation2 + $0xf3]]
        %s443 = sld [smem:[#allocation2 + $0xf4]]
        %s444 = sld [smem:[#allocation2 + $0xf5]]
        %s445 = sld [smem:[#allocation2 + $0xf6]]
        %s446 = sld [smem:[#allocation2 + $0xf7]]
        %s447 = sld [smem:[#allocation2 + $0xf8]]
        %s448 = sld [smem:[#allocation2 + $0xf9]]
        %s449 = sld [smem:[#allocation2 + $0xfa]]
        %s450 = sld [smem:[#allocation2 + $0xfb]]
        %s451 = sld [smem:[#allocation2 + $0xfc]]
        %s452 = sld [smem:[#allocation2 + $0xfd]]
        %s453 = sld [smem:[#allocation2 + $0xfe]]
        %s454 = sld [smem:[#allocation2 + $0xff]]
        %s455 = sld [smem:[#allocation2 + $0x100]]
        %v456 = vld [vmem:[%s176] sm:$0xff]
        %s457 = scalar_lea.vmem %s176, 8 [#allocation4]
        %v458 = vld [vmem:[%s457] sm:$0xff]
        %s459 = scalar_lea.vmem %s176, 16 [#allocation4]
        %v460 = vld [vmem:[%s459] sm:$0xff]
        %v461 = vstv %s199
        %v462 = vmul.f32 %v456, %v461
        %v463 = vstv %s207
        %v464 = vmul.f32 %v458, %v463
        %v465 = vadd.f32 %v462, %v464
        %v466 = vstv %s215
        %v467 = vmul.f32 %v460, %v466
        %v468 = vadd.f32 %v465, %v467
        %v469 = vstv %s223
        %v470 = vadd.f32 %v468, %v469
        %v471 = vmax.f32 %v470, 0.0
        %v472 = vstv %s200
        %v473 = vmul.f32 %v456, %v472
        %v474 = vstv %s208
        %v475 = vmul.f32 %v458, %v474
        %v476 = vadd.f32 %v473, %v475
        %v477 = vstv %s216
        %v478 = vmul.f32 %v460, %v477
        %v479 = vadd.f32 %v476, %v478
        %v480 = vstv %s224
        %v481 = vadd.f32 %v479, %v480
        %v482 = vmax.f32 %v481, 0.0
        %v483 = vstv %s201
        %v484 = vmul.f32 %v456, %v483
        %v485 = vstv %s209
        %v486 = vmul.f32 %v458, %v485
        %v487 = vadd.f32 %v484, %v486
        %v488 = vstv %s217
        %v489 = vmul.f32 %v460, %v488
        %v490 = vadd.f32 %v487, %v489
        %v491 = vstv %s225
        %v492 = vadd.f32 %v490, %v491
        %v493 = vmax.f32 %v492, 0.0
        %v494 = vstv %s202
        %v495 = vmul.f32 %v456, %v494
        %v496 = vstv %s210
        %v497 = vmul.f32 %v458, %v496
        %v498 = vadd.f32 %v495, %v497
        %v499 = vstv %s218
        %v500 = vmul.f32 %v460, %v499
        %v501 = vadd.f32 %v498, %v500
        %v502 = vstv %s226
        %v503 = vadd.f32 %v501, %v502
        %v504 = vmax.f32 %v503, 0.0
        %v505 = vstv %s203
        %v506 = vmul.f32 %v456, %v505
        %v507 = vstv %s211
        %v508 = vmul.f32 %v458, %v507
        %v509 = vadd.f32 %v506, %v508
        %v510 = vstv %s219
        %v511 = vmul.f32 %v460, %v510
        %v512 = vadd.f32 %v509, %v511
        %v513 = vstv %s227
        %v514 = vadd.f32 %v512, %v513
        %v515 = vmax.f32 %v514, 0.0
        %v516 = vstv %s204
        %v517 = vmul.f32 %v456, %v516
        %v518 = vstv %s212
        %v519 = vmul.f32 %v458, %v518
        %v520 = vadd.f32 %v517, %v519
        %v521 = vstv %s220
        %v522 = vmul.f32 %v460, %v521
        %v523 = vadd.f32 %v520, %v522
        %v524 = vstv %s228
        %v525 = vadd.f32 %v523, %v524
        %v526 = vmax.f32 %v525, 0.0
        %v527 = vstv %s205
        %v528 = vmul.f32 %v456, %v527
        %v529 = vstv %s213
        %v530 = vmul.f32 %v458, %v529
        %v531 = vadd.f32 %v528, %v530
        %v532 = vstv %s221
        %v533 = vmul.f32 %v460, %v532
        %v534 = vadd.f32 %v531, %v533
        %v535 = vstv %s229
        %v536 = vadd.f32 %v534, %v535
        %v537 = vmax.f32 %v536, 0.0
        %v538 = vstv %s206
        %v539 = vmul.f32 %v456, %v538
        %v540 = vstv %s214
        %v541 = vmul.f32 %v458, %v540
        %v542 = vadd.f32 %v539, %v541
        %v543 = vstv %s222
        %v544 = vmul.f32 %v460, %v543
        %v545 = vadd.f32 %v542, %v544
        %v546 = vstv %s230
        %v547 = vadd.f32 %v545, %v546
        %v548 = vmax.f32 %v547, 0.0
        %v549 = vstv %s231
        %v550 = vmul.f32 %v471, %v549
        %v551 = vstv %s239
        %v552 = vmul.f32 %v482, %v551
        %v553 = vadd.f32 %v550, %v552
        %v554 = vstv %s247
        %v555 = vmul.f32 %v493, %v554
        %v556 = vadd.f32 %v553, %v555
        %v557 = vstv %s255
        %v558 = vmul.f32 %v504, %v557
        %v559 = vadd.f32 %v556, %v558
        %v560 = vstv %s263
        %v561 = vmul.f32 %v515, %v560
        %v562 = vadd.f32 %v559, %v561
        %v563 = vstv %s271
        %v564 = vmul.f32 %v526, %v563
        %v565 = vadd.f32 %v562, %v564
        %v566 = vstv %s279
        %v567 = vmul.f32 %v537, %v566
        %v568 = vadd.f32 %v565, %v567
        %v569 = vstv %s287
        %v570 = vmul.f32 %v548, %v569
        %v571 = vadd.f32 %v568, %v570
        %v572 = vstv %s295
        %v573 = vadd.f32 %v571, %v572
        %v574 = vmax.f32 %v573, 0.0
        %v575 = vstv %s232
        %v576 = vmul.f32 %v471, %v575
        %v577 = vstv %s240
        %v578 = vmul.f32 %v482, %v577
        %v579 = vadd.f32 %v576, %v578
        %v580 = vstv %s248
        %v581 = vmul.f32 %v493, %v580
        %v582 = vadd.f32 %v579, %v581
        %v583 = vstv %s256
        %v584 = vmul.f32 %v504, %v583
        %v585 = vadd.f32 %v582, %v584
        %v586 = vstv %s264
        %v587 = vmul.f32 %v515, %v586
        %v588 = vadd.f32 %v585, %v587
        %v589 = vstv %s272
        %v590 = vmul.f32 %v526, %v589
        %v591 = vadd.f32 %v588, %v590
        %v592 = vstv %s280
        %v593 = vmul.f32 %v537, %v592
        %v594 = vadd.f32 %v591, %v593
        %v595 = vstv %s288
        %v596 = vmul.f32 %v548, %v595
        %v597 = vadd.f32 %v594, %v596
        %v598 = vstv %s296
        %v599 = vadd.f32 %v597, %v598
        %v600 = vmax.f32 %v599, 0.0
        %v601 = vstv %s233
        %v602 = vmul.f32 %v471, %v601
        %v603 = vstv %s241
        %v604 = vmul.f32 %v482, %v603
        %v605 = vadd.f32 %v602, %v604
        %v606 = vstv %s249
        %v607 = vmul.f32 %v493, %v606
        %v608 = vadd.f32 %v605, %v607
        %v609 = vstv %s257
        %v610 = vmul.f32 %v504, %v609
        %v611 = vadd.f32 %v608, %v610
        %v612 = vstv %s265
        %v613 = vmul.f32 %v515, %v612
        %v614 = vadd.f32 %v611, %v613
        %v615 = vstv %s273
        %v616 = vmul.f32 %v526, %v615
        %v617 = vadd.f32 %v614, %v616
        %v618 = vstv %s281
        %v619 = vmul.f32 %v537, %v618
        %v620 = vadd.f32 %v617, %v619
        %v621 = vstv %s289
        %v622 = vmul.f32 %v548, %v621
        %v623 = vadd.f32 %v620, %v622
        %v624 = vstv %s297
        %v625 = vadd.f32 %v623, %v624
        %v626 = vmax.f32 %v625, 0.0
        %v627 = vstv %s234
        %v628 = vmul.f32 %v471, %v627
        %v629 = vstv %s242
        %v630 = vmul.f32 %v482, %v629
        %v631 = vadd.f32 %v628, %v630
        %v632 = vstv %s250
        %v633 = vmul.f32 %v493, %v632
        %v634 = vadd.f32 %v631, %v633
        %v635 = vstv %s258
        %v636 = vmul.f32 %v504, %v635
        %v637 = vadd.f32 %v634, %v636
        %v638 = vstv %s266
        %v639 = vmul.f32 %v515, %v638
        %v640 = vadd.f32 %v637, %v639
        %v641 = vstv %s274
        %v642 = vmul.f32 %v526, %v641
        %v643 = vadd.f32 %v640, %v642
        %v644 = vstv %s282
        %v645 = vmul.f32 %v537, %v644
        %v646 = vadd.f32 %v643, %v645
        %v647 = vstv %s290
        %v648 = vmul.f32 %v548, %v647
        %v649 = vadd.f32 %v646, %v648
        %v650 = vstv %s298
        %v651 = vadd.f32 %v649, %v650
        %v652 = vmax.f32 %v651, 0.0
        %v653 = vstv %s235
        %v654 = vmul.f32 %v471, %v653
        %v655 = vstv %s243
        %v656 = vmul.f32 %v482, %v655
        %v657 = vadd.f32 %v654, %v656
        %v658 = vstv %s251
        %v659 = vmul.f32 %v493, %v658
        %v660 = vadd.f32 %v657, %v659
        %v661 = vstv %s259
        %v662 = vmul.f32 %v504, %v661
        %v663 = vadd.f32 %v660, %v662
        %v664 = vstv %s267
        %v665 = vmul.f32 %v515, %v664
        %v666 = vadd.f32 %v663, %v665
        %v667 = vstv %s275
        %v668 = vmul.f32 %v526, %v667
        %v669 = vadd.f32 %v666, %v668
        %v670 = vstv %s283
        %v671 = vmul.f32 %v537, %v670
        %v672 = vadd.f32 %v669, %v671
        %v673 = vstv %s291
        %v674 = vmul.f32 %v548, %v673
        %v675 = vadd.f32 %v672, %v674
        %v676 = vstv %s299
        %v677 = vadd.f32 %v675, %v676
        %v678 = vmax.f32 %v677, 0.0
        %v679 = vstv %s236
        %v680 = vmul.f32 %v471, %v679
        %v681 = vstv %s244
        %v682 = vmul.f32 %v482, %v681
        %v683 = vadd.f32 %v680, %v682
        %v684 = vstv %s252
        %v685 = vmul.f32 %v493, %v684
        %v686 = vadd.f32 %v683, %v685
        %v687 = vstv %s260
        %v688 = vmul.f32 %v504, %v687
        %v689 = vadd.f32 %v686, %v688
        %v690 = vstv %s268
        %v691 = vmul.f32 %v515, %v690
        %v692 = vadd.f32 %v689, %v691
        %v693 = vstv %s276
        %v694 = vmul.f32 %v526, %v693
        %v695 = vadd.f32 %v692, %v694
        %v696 = vstv %s284
        %v697 = vmul.f32 %v537, %v696
        %v698 = vadd.f32 %v695, %v697
        %v699 = vstv %s292
        %v700 = vmul.f32 %v548, %v699
        %v701 = vadd.f32 %v698, %v700
        %v702 = vstv %s300
        %v703 = vadd.f32 %v701, %v702
        %v704 = vmax.f32 %v703, 0.0
        %v705 = vstv %s237
        %v706 = vmul.f32 %v471, %v705
        %v707 = vstv %s245
        %v708 = vmul.f32 %v482, %v707
        %v709 = vadd.f32 %v706, %v708
        %v710 = vstv %s253
        %v711 = vmul.f32 %v493, %v710
        %v712 = vadd.f32 %v709, %v711
        %v713 = vstv %s261
        %v714 = vmul.f32 %v504, %v713
        %v715 = vadd.f32 %v712, %v714
        %v716 = vstv %s269
        %v717 = vmul.f32 %v515, %v716
        %v718 = vadd.f32 %v715, %v717
        %v719 = vstv %s277
        %v720 = vmul.f32 %v526, %v719
        %v721 = vadd.f32 %v718, %v720
        %v722 = vstv %s285
        %v723 = vmul.f32 %v537, %v722
        %v724 = vadd.f32 %v721, %v723
        %v725 = vstv %s293
        %v726 = vmul.f32 %v548, %v725
        %v727 = vadd.f32 %v724, %v726
        %v728 = vstv %s301
        %v729 = vadd.f32 %v727, %v728
        %v730 = vmax.f32 %v729, 0.0
        %v731 = vstv %s238
        %v732 = vmul.f32 %v471, %v731
        %v733 = vstv %s246
        %v734 = vmul.f32 %v482, %v733
        %v735 = vadd.f32 %v732, %v734
        %v736 = vstv %s254
        %v737 = vmul.f32 %v493, %v736
        %v738 = vadd.f32 %v735, %v737
        %v739 = vstv %s262
        %v740 = vmul.f32 %v504, %v739
        %v741 = vadd.f32 %v738, %v740
        %v742 = vstv %s270
        %v743 = vmul.f32 %v515, %v742
        %v744 = vadd.f32 %v741, %v743
        %v745 = vstv %s278
        %v746 = vmul.f32 %v526, %v745
        %v747 = vadd.f32 %v744, %v746
        %v748 = vstv %s286
        %v749 = vmul.f32 %v537, %v748
        %v750 = vadd.f32 %v747, %v749
        %v751 = vstv %s294
        %v752 = vmul.f32 %v548, %v751
        %v753 = vadd.f32 %v750, %v752
        %v754 = vstv %s302
        %v755 = vadd.f32 %v753, %v754
        %v756 = vmax.f32 %v755, 0.0
        %v757 = vstv %s303
        %v758 = vmul.f32 %v574, %v757
        %v759 = vstv %s311
        %v760 = vmul.f32 %v600, %v759
        %v761 = vadd.f32 %v758, %v760
        %v762 = vstv %s319
        %v763 = vmul.f32 %v626, %v762
        %v764 = vadd.f32 %v761, %v763
        %v765 = vstv %s327
        %v766 = vmul.f32 %v652, %v765
        %v767 = vadd.f32 %v764, %v766
        %v768 = vstv %s335
        %v769 = vmul.f32 %v678, %v768
        %v770 = vadd.f32 %v767, %v769
        %v771 = vstv %s343
        %v772 = vmul.f32 %v704, %v771
        %v773 = vadd.f32 %v770, %v772
        %v774 = vstv %s351
        %v775 = vmul.f32 %v730, %v774
        %v776 = vadd.f32 %v773, %v775
        %v777 = vstv %s359
        %v778 = vmul.f32 %v756, %v777
        %v779 = vadd.f32 %v776, %v778
        %v780 = vstv %s367
        %v781 = vadd.f32 %v779, %v780
        %v782 = vmax.f32 %v781, 0.0
        %v783 = vstv %s304
        %v784 = vmul.f32 %v574, %v783
        %v785 = vstv %s312
        %v786 = vmul.f32 %v600, %v785
        %v787 = vadd.f32 %v784, %v786
        %v788 = vstv %s320
        %v789 = vmul.f32 %v626, %v788
        %v790 = vadd.f32 %v787, %v789
        %v791 = vstv %s328
        %v792 = vmul.f32 %v652, %v791
        %v793 = vadd.f32 %v790, %v792
        %v794 = vstv %s336
        %v795 = vmul.f32 %v678, %v794
        %v796 = vadd.f32 %v793, %v795
        %v797 = vstv %s344
        %v798 = vmul.f32 %v704, %v797
        %v799 = vadd.f32 %v796, %v798
        %v800 = vstv %s352
        %v801 = vmul.f32 %v730, %v800
        %v802 = vadd.f32 %v799, %v801
        %v803 = vstv %s360
        %v804 = vmul.f32 %v756, %v803
        %v805 = vadd.f32 %v802, %v804
        %v806 = vstv %s368
        %v807 = vadd.f32 %v805, %v806
        %v808 = vmax.f32 %v807, 0.0
        %v809 = vstv %s305
        %v810 = vmul.f32 %v574, %v809
        %v811 = vstv %s313
        %v812 = vmul.f32 %v600, %v811
        %v813 = vadd.f32 %v810, %v812
        %v814 = vstv %s321
        %v815 = vmul.f32 %v626, %v814
        %v816 = vadd.f32 %v813, %v815
        %v817 = vstv %s329
        %v818 = vmul.f32 %v652, %v817
        %v819 = vadd.f32 %v816, %v818
        %v820 = vstv %s337
        %v821 = vmul.f32 %v678, %v820
        %v822 = vadd.f32 %v819, %v821
        %v823 = vstv %s345
        %v824 = vmul.f32 %v704, %v823
        %v825 = vadd.f32 %v822, %v824
        %v826 = vstv %s353
        %v827 = vmul.f32 %v730, %v826
        %v828 = vadd.f32 %v825, %v827
        %v829 = vstv %s361
        %v830 = vmul.f32 %v756, %v829
        %v831 = vadd.f32 %v828, %v830
        %v832 = vstv %s369
        %v833 = vadd.f32 %v831, %v832
        %v834 = vmax.f32 %v833, 0.0
        %v835 = vstv %s306
        %v836 = vmul.f32 %v574, %v835
        %v837 = vstv %s314
        %v838 = vmul.f32 %v600, %v837
        %v839 = vadd.f32 %v836, %v838
        %v840 = vstv %s322
        %v841 = vmul.f32 %v626, %v840
        %v842 = vadd.f32 %v839, %v841
        %v843 = vstv %s330
        %v844 = vmul.f32 %v652, %v843
        %v845 = vadd.f32 %v842, %v844
        %v846 = vstv %s338
        %v847 = vmul.f32 %v678, %v846
        %v848 = vadd.f32 %v845, %v847
        %v849 = vstv %s346
        %v850 = vmul.f32 %v704, %v849
        %v851 = vadd.f32 %v848, %v850
        %v852 = vstv %s354
        %v853 = vmul.f32 %v730, %v852
        %v854 = vadd.f32 %v851, %v853
        %v855 = vstv %s362
        %v856 = vmul.f32 %v756, %v855
        %v857 = vadd.f32 %v854, %v856
        %v858 = vstv %s370
        %v859 = vadd.f32 %v857, %v858
        %v860 = vmax.f32 %v859, 0.0
        %v861 = vstv %s307
        %v862 = vmul.f32 %v574, %v861
        %v863 = vstv %s315
        %v864 = vmul.f32 %v600, %v863
        %v865 = vadd.f32 %v862, %v864
        %v866 = vstv %s323
        %v867 = vmul.f32 %v626, %v866
        %v868 = vadd.f32 %v865, %v867
        %v869 = vstv %s331
        %v870 = vmul.f32 %v652, %v869
        %v871 = vadd.f32 %v868, %v870
        %v872 = vstv %s339
        %v873 = vmul.f32 %v678, %v872
        %v874 = vadd.f32 %v871, %v873
        %v875 = vstv %s347
        %v876 = vmul.f32 %v704, %v875
        %v877 = vadd.f32 %v874, %v876
        %v878 = vstv %s355
        %v879 = vmul.f32 %v730, %v878
        %v880 = vadd.f32 %v877, %v879
        %v881 = vstv %s363
        %v882 = vmul.f32 %v756, %v881
        %v883 = vadd.f32 %v880, %v882
        %v884 = vstv %s371
        %v885 = vadd.f32 %v883, %v884
        %v886 = vmax.f32 %v885, 0.0
        %v887 = vstv %s308
        %v888 = vmul.f32 %v574, %v887
        %v889 = vstv %s316
        %v890 = vmul.f32 %v600, %v889
        %v891 = vadd.f32 %v888, %v890
        %v892 = vstv %s324
        %v893 = vmul.f32 %v626, %v892
        %v894 = vadd.f32 %v891, %v893
        %v895 = vstv %s332
        %v896 = vmul.f32 %v652, %v895
        %v897 = vadd.f32 %v894, %v896
        %v898 = vstv %s340
        %v899 = vmul.f32 %v678, %v898
        %v900 = vadd.f32 %v897, %v899
        %v901 = vstv %s348
        %v902 = vmul.f32 %v704, %v901
        %v903 = vadd.f32 %v900, %v902
        %v904 = vstv %s356
        %v905 = vmul.f32 %v730, %v904
        %v906 = vadd.f32 %v903, %v905
        %v907 = vstv %s364
        %v908 = vmul.f32 %v756, %v907
        %v909 = vadd.f32 %v906, %v908
        %v910 = vstv %s372
        %v911 = vadd.f32 %v909, %v910
        %v912 = vmax.f32 %v911, 0.0
        %v913 = vstv %s309
        %v914 = vmul.f32 %v574, %v913
        %v915 = vstv %s317
        %v916 = vmul.f32 %v600, %v915
        %v917 = vadd.f32 %v914, %v916
        %v918 = vstv %s325
        %v919 = vmul.f32 %v626, %v918
        %v920 = vadd.f32 %v917, %v919
        %v921 = vstv %s333
        %v922 = vmul.f32 %v652, %v921
        %v923 = vadd.f32 %v920, %v922
        %v924 = vstv %s341
        %v925 = vmul.f32 %v678, %v924
        %v926 = vadd.f32 %v923, %v925
        %v927 = vstv %s349
        %v928 = vmul.f32 %v704, %v927
        %v929 = vadd.f32 %v926, %v928
        %v930 = vstv %s357
        %v931 = vmul.f32 %v730, %v930
        %v932 = vadd.f32 %v929, %v931
        %v933 = vstv %s365
        %v934 = vmul.f32 %v756, %v933
        %v935 = vadd.f32 %v932, %v934
        %v936 = vstv %s373
        %v937 = vadd.f32 %v935, %v936
        %v938 = vmax.f32 %v937, 0.0
        %v939 = vstv %s310
        %v940 = vmul.f32 %v574, %v939
        %v941 = vstv %s318
        %v942 = vmul.f32 %v600, %v941
        %v943 = vadd.f32 %v940, %v942
        %v944 = vstv %s326
        %v945 = vmul.f32 %v626, %v944
        %v946 = vadd.f32 %v943, %v945
        %v947 = vstv %s334
        %v948 = vmul.f32 %v652, %v947
        %v949 = vadd.f32 %v946, %v948
        %v950 = vstv %s342
        %v951 = vmul.f32 %v678, %v950
        %v952 = vadd.f32 %v949, %v951
        %v953 = vstv %s350
        %v954 = vmul.f32 %v704, %v953
        %v955 = vadd.f32 %v952, %v954
        %v956 = vstv %s358
        %v957 = vmul.f32 %v730, %v956
        %v958 = vadd.f32 %v955, %v957
        %v959 = vstv %s366
        %v960 = vmul.f32 %v756, %v959
        %v961 = vadd.f32 %v958, %v960
        %v962 = vstv %s374
        %v963 = vadd.f32 %v961, %v962
        %v964 = vmax.f32 %v963, 0.0
        %v965 = vstv %s375
        %v966 = vmul.f32 %v782, %v965
        %v967 = vstv %s383
        %v968 = vmul.f32 %v808, %v967
        %v969 = vadd.f32 %v966, %v968
        %v970 = vstv %s391
        %v971 = vmul.f32 %v834, %v970
        %v972 = vadd.f32 %v969, %v971
        %v973 = vstv %s399
        %v974 = vmul.f32 %v860, %v973
        %v975 = vadd.f32 %v972, %v974
        %v976 = vstv %s407
        %v977 = vmul.f32 %v886, %v976
        %v978 = vadd.f32 %v975, %v977
        %v979 = vstv %s415
        %v980 = vmul.f32 %v912, %v979
        %v981 = vadd.f32 %v978, %v980
        %v982 = vstv %s423
        %v983 = vmul.f32 %v938, %v982
        %v984 = vadd.f32 %v981, %v983
        %v985 = vstv %s431
        %v986 = vmul.f32 %v964, %v985
        %v987 = vadd.f32 %v984, %v986
        %v988 = vstv %s439
        %v989 = vadd.f32 %v987, %v988
        %v990 = vmax.f32 %v989, 0.0
        %v991 = vstv %s376
        %v992 = vmul.f32 %v782, %v991
        %v993 = vstv %s384
        %v994 = vmul.f32 %v808, %v993
        %v995 = vadd.f32 %v992, %v994
        %v996 = vstv %s392
        %v997 = vmul.f32 %v834, %v996
        %v998 = vadd.f32 %v995, %v997
        %v999 = vstv %s400
        %v1000 = vmul.f32 %v860, %v999
        %v1001 = vadd.f32 %v998, %v1000
        %v1002 = vstv %s408
        %v1003 = vmul.f32 %v886, %v1002
        %v1004 = vadd.f32 %v1001, %v1003
        %v1005 = vstv %s416
        %v1006 = vmul.f32 %v912, %v1005
        %v1007 = vadd.f32 %v1004, %v1006
        %v1008 = vstv %s424
        %v1009 = vmul.f32 %v938, %v1008
        %v1010 = vadd.f32 %v1007, %v1009
        %v1011 = vstv %s432
        %v1012 = vmul.f32 %v964, %v1011
        %v1013 = vadd.f32 %v1010, %v1012
        %v1014 = vstv %s440
        %v1015 = vadd.f32 %v1013, %v1014
        %v1016 = vmax.f32 %v1015, 0.0
        %v1017 = vstv %s377
        %v1018 = vmul.f32 %v782, %v1017
        %v1019 = vstv %s385
        %v1020 = vmul.f32 %v808, %v1019
        %v1021 = vadd.f32 %v1018, %v1020
        %v1022 = vstv %s393
        %v1023 = vmul.f32 %v834, %v1022
        %v1024 = vadd.f32 %v1021, %v1023
        %v1025 = vstv %s401
        %v1026 = vmul.f32 %v860, %v1025
        %v1027 = vadd.f32 %v1024, %v1026
        %v1028 = vstv %s409
        %v1029 = vmul.f32 %v886, %v1028
        %v1030 = vadd.f32 %v1027, %v1029
        %v1031 = vstv %s417
        %v1032 = vmul.f32 %v912, %v1031
        %v1033 = vadd.f32 %v1030, %v1032
        %v1034 = vstv %s425
        %v1035 = vmul.f32 %v938, %v1034
        %v1036 = vadd.f32 %v1033, %v1035
        %v1037 = vstv %s433
        %v1038 = vmul.f32 %v964, %v1037
        %v1039 = vadd.f32 %v1036, %v1038
        %v1040 = vstv %s441
        %v1041 = vadd.f32 %v1039, %v1040
        %v1042 = vmax.f32 %v1041, 0.0
        %v1043 = vstv %s378
        %v1044 = vmul.f32 %v782, %v1043
        %v1045 = vstv %s386
        %v1046 = vmul.f32 %v808, %v1045
        %v1047 = vadd.f32 %v1044, %v1046
        %v1048 = vstv %s394
        %v1049 = vmul.f32 %v834, %v1048
        %v1050 = vadd.f32 %v1047, %v1049
        %v1051 = vstv %s402
        %v1052 = vmul.f32 %v860, %v1051
        %v1053 = vadd.f32 %v1050, %v1052
        %v1054 = vstv %s410
        %v1055 = vmul.f32 %v886, %v1054
        %v1056 = vadd.f32 %v1053, %v1055
        %v1057 = vstv %s418
        %v1058 = vmul.f32 %v912, %v1057
        %v1059 = vadd.f32 %v1056, %v1058
        %v1060 = vstv %s426
        %v1061 = vmul.f32 %v938, %v1060
        %v1062 = vadd.f32 %v1059, %v1061
        %v1063 = vstv %s434
        %v1064 = vmul.f32 %v964, %v1063
        %v1065 = vadd.f32 %v1062, %v1064
        %v1066 = vstv %s442
        %v1067 = vadd.f32 %v1065, %v1066
        %v1068 = vmax.f32 %v1067, 0.0
        %v1069 = vstv %s379
        %v1070 = vmul.f32 %v782, %v1069
        %v1071 = vstv %s387
        %v1072 = vmul.f32 %v808, %v1071
        %v1073 = vadd.f32 %v1070, %v1072
        %v1074 = vstv %s395
        %v1075 = vmul.f32 %v834, %v1074
        %v1076 = vadd.f32 %v1073, %v1075
        %v1077 = vstv %s403
        %v1078 = vmul.f32 %v860, %v1077
        %v1079 = vadd.f32 %v1076, %v1078
        %v1080 = vstv %s411
        %v1081 = vmul.f32 %v886, %v1080
        %v1082 = vadd.f32 %v1079, %v1081
        %v1083 = vstv %s419
        %v1084 = vmul.f32 %v912, %v1083
        %v1085 = vadd.f32 %v1082, %v1084
        %v1086 = vstv %s427
        %v1087 = vmul.f32 %v938, %v1086
        %v1088 = vadd.f32 %v1085, %v1087
        %v1089 = vstv %s435
        %v1090 = vmul.f32 %v964, %v1089
        %v1091 = vadd.f32 %v1088, %v1090
        %v1092 = vstv %s443
        %v1093 = vadd.f32 %v1091, %v1092
        %v1094 = vmax.f32 %v1093, 0.0
        %v1095 = vstv %s380
        %v1096 = vmul.f32 %v782, %v1095
        %v1097 = vstv %s388
        %v1098 = vmul.f32 %v808, %v1097
        %v1099 = vadd.f32 %v1096, %v1098
        %v1100 = vstv %s396
        %v1101 = vmul.f32 %v834, %v1100
        %v1102 = vadd.f32 %v1099, %v1101
        %v1103 = vstv %s404
        %v1104 = vmul.f32 %v860, %v1103
        %v1105 = vadd.f32 %v1102, %v1104
        %v1106 = vstv %s412
        %v1107 = vmul.f32 %v886, %v1106
        %v1108 = vadd.f32 %v1105, %v1107
        %v1109 = vstv %s420
        %v1110 = vmul.f32 %v912, %v1109
        %v1111 = vadd.f32 %v1108, %v1110
        %v1112 = vstv %s428
        %v1113 = vmul.f32 %v938, %v1112
        %v1114 = vadd.f32 %v1111, %v1113
        %v1115 = vstv %s436
        %v1116 = vmul.f32 %v964, %v1115
        %v1117 = vadd.f32 %v1114, %v1116
        %v1118 = vstv %s444
        %v1119 = vadd.f32 %v1117, %v1118
        %v1120 = vmax.f32 %v1119, 0.0
        %v1121 = vstv %s381
        %v1122 = vmul.f32 %v782, %v1121
        %v1123 = vstv %s389
        %v1124 = vmul.f32 %v808, %v1123
        %v1125 = vadd.f32 %v1122, %v1124
        %v1126 = vstv %s397
        %v1127 = vmul.f32 %v834, %v1126
        %v1128 = vadd.f32 %v1125, %v1127
        %v1129 = vstv %s405
        %v1130 = vmul.f32 %v860, %v1129
        %v1131 = vadd.f32 %v1128, %v1130
        %v1132 = vstv %s413
        %v1133 = vmul.f32 %v886, %v1132
        %v1134 = vadd.f32 %v1131, %v1133
        %v1135 = vstv %s421
        %v1136 = vmul.f32 %v912, %v1135
        %v1137 = vadd.f32 %v1134, %v1136
        %v1138 = vstv %s429
        %v1139 = vmul.f32 %v938, %v1138
        %v1140 = vadd.f32 %v1137, %v1139
        %v1141 = vstv %s437
        %v1142 = vmul.f32 %v964, %v1141
        %v1143 = vadd.f32 %v1140, %v1142
        %v1144 = vstv %s445
        %v1145 = vadd.f32 %v1143, %v1144
        %v1146 = vmax.f32 %v1145, 0.0
        %v1147 = vstv %s382
        %v1148 = vmul.f32 %v782, %v1147
        %v1149 = vstv %s390
        %v1150 = vmul.f32 %v808, %v1149
        %v1151 = vadd.f32 %v1148, %v1150
        %v1152 = vstv %s398
        %v1153 = vmul.f32 %v834, %v1152
        %v1154 = vadd.f32 %v1151, %v1153
        %v1155 = vstv %s406
        %v1156 = vmul.f32 %v860, %v1155
        %v1157 = vadd.f32 %v1154, %v1156
        %v1158 = vstv %s414
        %v1159 = vmul.f32 %v886, %v1158
        %v1160 = vadd.f32 %v1157, %v1159
        %v1161 = vstv %s422
        %v1162 = vmul.f32 %v912, %v1161
        %v1163 = vadd.f32 %v1160, %v1162
        %v1164 = vstv %s430
        %v1165 = vmul.f32 %v938, %v1164
        %v1166 = vadd.f32 %v1163, %v1165
        %v1167 = vstv %s438
        %v1168 = vmul.f32 %v964, %v1167
        %v1169 = vadd.f32 %v1166, %v1168
        %v1170 = vstv %s446
        %v1171 = vadd.f32 %v1169, %v1170
        %v1172 = vmax.f32 %v1171, 0.0
        %v1173 = vstv %s447
        %v1174 = vmul.f32 %v990, %v1173
        %v1175 = vstv %s448
        %v1176 = vmul.f32 %v1016, %v1175
        %v1177 = vadd.f32 %v1174, %v1176
        %v1178 = vstv %s449
        %v1179 = vmul.f32 %v1042, %v1178
        %v1180 = vadd.f32 %v1177, %v1179
        %v1181 = vstv %s450
        %v1182 = vmul.f32 %v1068, %v1181
        %v1183 = vadd.f32 %v1180, %v1182
        %v1184 = vstv %s451
        %v1185 = vmul.f32 %v1094, %v1184
        %v1186 = vadd.f32 %v1183, %v1185
        %v1187 = vstv %s452
        %v1188 = vmul.f32 %v1120, %v1187
        %v1189 = vadd.f32 %v1186, %v1188
        %v1190 = vstv %s453
        %v1191 = vmul.f32 %v1146, %v1190
        %v1192 = vadd.f32 %v1189, %v1191
        %v1193 = vstv %s454
        %v1194 = vmul.f32 %v1172, %v1193
        %v1195 = vadd.f32 %v1192, %v1194
        %v1196 = vstv %s455
        %v1197 = vadd.f32 %v1195, %v1196
        %1198 = vst [vmem:[%s198] sm:$0xff] %v1197
        %p1199 = scmp.lt.s32.totalorder %s14, 7
        %s1200 = scalar_select %p1199, %s14, 7
        %s1201 = smul.addr %s1200, 8
        %s1202 = scalar_lea.vmem %s2, %s1201
        // Predicated region
        $region71: #{relu_diffusion_forward.1} parent=61 // pred_check
          %p1203 = pneg %p79
        $region72: #{relu_diffusion_forward.1} parent=61 // pred_check_branch
          %1205 = sbr.rel (%p1203) target = $region74
        $region73: #{relu_diffusion_forward.1} parent=61 // pred_region
          _
        $region74: #{relu_diffusion_forward.1} parent=61 // pred_fallthru
          _
      $region62: #{relu_diffusion_forward.1} parent=5 // pred_fallthru
        _
      %p1206 = scmp.le.s32.totalorder 2, %s9
      // Predicated region
      $region75: #{relu_diffusion_forward.1} parent=5 // pred_check
        %p1207 = pneg %p1206
      $region76: #{relu_diffusion_forward.1} parent=5 // pred_check_branch
        %1209 = sbr.rel (%p1207) target = $region78
      $region77: #{relu_diffusion_forward.1} parent=5 // pred_region
        %s1210 = ssub.s32 %s9, 2
        // Predicated region
        $region79: #{relu_diffusion_forward.1} parent=77 // pred_check
          %p1211 = pneg %p85
        $region80: #{relu_diffusion_forward.1} parent=77 // pred_check_branch
          %1213 = sbr.rel (%p1211) target = $region82
        $region81: #{relu_diffusion_forward.1} parent=77 // pred_region
          %p1214 = scmp.lt.s32.totalorder %s15, 7
          %s1215 = scalar_select %p1214, %s15, 7
          %s1216 = smul.addr %s1215, 8
          %s1217 = scalar_lea.vmem %s2, %s1216
        $region82: #{relu_diffusion_forward.1} parent=77 // pred_fallthru
          _
      $region78: #{relu_diffusion_forward.1} parent=5 // pred_fallthru
        _
    $region6: #{relu_diffusion_forward.1} parent=1 // loop_footer
      %s13 = sadd.s32 1, %s9
    $region7: #{relu_diffusion_forward.1} parent=1 // loop_footer_branch
      %8 = sbr.rel target = $region3
    $region8: #{relu_diffusion_forward.1} parent=1 // loop_exit
      _
    %1218 = vsyncpa [#allocation3], 1
    %s1219 = scalar_lea.sflag [#allocation3], 1
    %1220 = vsyncpa %s1219, 1

</llo_original>
